<compile_context>
chip_gen: v7x
topology: tpu7x:2x2x1
jax: 0.10.0
libtpu: 0.0.40
codegen_flags: <defaults>
</compile_context>

<pallas_src>
import jax
import jax.numpy as jnp
from jax.experimental import pallas as pl
from jax.experimental.pallas import tpu as pltpu

LANE = 128  # TPU lane width; channel dims are padded to a multiple of this.


def _round_up(n, m):
    return ((n + m - 1) // m) * m


def _pick_row_tile(hout, max_rows):
    """Largest divisor of `hout` that is <= max_rows (>= 1)."""
    best = 1
    for d in range(1, hout + 1):
        if hout % d == 0 and d <= max_rows:
            best = d
    return best


def _pad_axis(a, axis, new_size):
    pad = [(0, 0)] * a.ndim
    pad[axis] = (0, new_size - a.shape[axis])
    return jnp.pad(a, pad)


def _make_fused_mbconv_kernel(*, K, stride, padding, H, W, Hp, Wp,
                              row_tile, tile_in_rows, Wout,
                              has_expand, has_shortcut, compute_dtype):
    """Builds the fused expand -> depthwise -> project (+residual) kernel."""

    def kernel(*refs):
        idx = 0
        x_ref = refs[idx]; idx += 1
        if has_expand:
            w_exp_ref, b_exp_ref = refs[idx], refs[idx + 1]; idx += 2
        rest = refs[idx:]
        w_dw_ref, b_dw_ref, w_proj_ref, b_proj_ref, o_ref = rest[:5]
        h_scr = rest[5] if stride > 1 else None

        t = pl.program_id(1)
        row0 = pl.multiple_of(t * (row_tile * stride), row_tile * stride)

        # Halo'd input row slab for this output-row tile (lane-dense channels).
        xs = x_ref[0, pl.ds(row0, tile_in_rows)]          # (Rin, Wp, Cin_p)
        cin_p = xs.shape[-1]

        # ---- stage 1: 1x1 expand + ReLU6 (MXU, f32 accumulator) ------------
        if has_expand:
            cdw_p = w_exp_ref.shape[-1]
            y = jnp.dot(xs.reshape(-1, cin_p), w_exp_ref[...],
                        preferred_element_type=jnp.float32)
            y = y.reshape(tile_in_rows, Wp, cdw_p) + b_exp_ref[...]
            h = jnp.clip(y, 0.0, 6.0)
            if padding > 0:
                # Depthwise zero-pads *its* input (the expanded activation):
                # zero the halo ring (bias + ReLU6 made it non-zero) with an
                # in-kernel iota mask -- no extra HBM mask stream.
                ri = jax.lax.broadcasted_iota(
                    jnp.int32, (tile_in_rows, Wp, 1), 0) + row0
                ci = jax.lax.broadcasted_iota(
                    jnp.int32, (tile_in_rows, Wp, 1), 1)
                interior = ((ri >= padding) & (ri < padding + H)
                            & (ci >= padding) & (ci < padding + W))
                h = jnp.where(interior, h, 0.0)
            h = h.astype(compute_dtype)
        else:
            h = xs                                          # halo already zero
            cdw_p = cin_p

        wdw = w_dw_ref[...]                                 # (K, K, Cdw_p)
        bdw = b_dw_ref[...]                                 # (1, Cdw_p) f32

        # ---- stage 2: KxK depthwise + ReLU6 (VPU, f32 accumulator) ---------
        acc = jnp.zeros((row_tile, Wout, cdw_p), jnp.float32)
        if stride == 1:
            # Hoist sublane (W) shifts out of the K*K loop: K shifted views.
            h_kw = [jax.lax.slice(h, (0, kw, 0),
                                  (tile_in_rows, kw + Wout, cdw_p))
                    for kw in range(K)]
            for kh in range(K):
                for kw in range(K):
                    acc = acc + h_kw[kw][kh:kh + row_tile] * wdw[kh, kw]
        else:
            # Strided taps read straight from a VMEM scratch (sublane-strided
            # loads): no redundant stride-1 MACs, no strided value slices.
            h_scr[...] = h.astype(h_scr.dtype)
            for kh in range(K):
                for kw in range(K):
                    patch = h_scr[pl.ds(kh, row_tile, stride=stride),
                                  pl.ds(kw, Wout, stride=stride), :]
                    acc = acc + patch * wdw[kh, kw]
        dw = jnp.clip(acc + bdw, 0.0, 6.0).astype(compute_dtype)

        # ---- stage 3: 1x1 project (+ fused residual), no activation --------
        cout_p = w_proj_ref.shape[-1]
        y = jnp.dot(dw.reshape(-1, cdw_p), w_proj_ref[...],
                    preferred_element_type=jnp.float32)
        y = y.reshape(row_tile, Wout, cout_p) + b_proj_ref[...]
        if has_shortcut:
            res = jax.lax.slice(xs, (padding, padding, 0),
                                (padding + row_tile, padding + Wout, cin_p))
            y = y + res.astype(jnp.float32)
        o_ref[0] = y.astype(o_ref.dtype)                    # lane-dense store

    return kernel


def mbconv_block_nhwc(x, params, *, kernel_size, stride, padding,
                      inverted_bottleneck, shortcut,
                      compute_dtype=jnp.float32, row_tile=None):
    """Fused MBConv block. x: (B, H, W, Cin) NHWC."""
    B, H, W, Cin = x.shape
    K = kernel_size
    Hp, Wp = H + 2 * padding, W + 2 * padding
    Hout = (Hp - K) // stride + 1
    Wout = (Wp - K) // stride + 1
    Cdw = params["w_dw"].shape[-1]
    Cout = params["w_proj"].shape[1]
    Cin_p = _round_up(Cin, LANE)
    Cdw_p = _round_up(Cdw, LANE)
    Cout_p = _round_up(Cout, LANE)

    if shortcut and not (stride == 1 and Cin == Cout
                         and Hout == H and Wout == W):
        raise ValueError("shortcut=True requires stride==1, Cin==Cout and "
                         "'same' spatial output size")
    if not inverted_bottleneck and Cdw != Cin:
        raise ValueError("without inverted_bottleneck the depthwise channel "
                         "count must equal Cin")

    # --- lane-dense operands: pad channel dims to a multiple of 128 ---------
    # Padded lanes of weights/biases are zero, so they stay exactly zero
    # through expand/ReLU6/depthwise/project/residual; the wrapper slices them
    # off at the end.  Activations/weights optionally run in bf16 (v6e/v7x);
    # biases and all accumulators stay f32.
    xp = jnp.pad(x, ((0, 0), (padding, padding), (padding, padding),
                     (0, Cin_p - Cin))).astype(compute_dtype)
    w_dw = _pad_axis(params["w_dw"], 2, Cdw_p).astype(compute_dtype)
    b_dw = _pad_axis(params["b_dw"], 1, Cdw_p).astype(jnp.float32)
    w_proj = _pad_axis(_pad_axis(params["w_proj"], 0, Cdw_p),
                       1, Cout_p).astype(compute_dtype)
    b_proj = _pad_axis(params["b_proj"], 1, Cout_p).astype(jnp.float32)
    if inverted_bottleneck:
        w_exp = _pad_axis(_pad_axis(params["w_exp"], 0, Cin_p),
                          1, Cdw_p).astype(compute_dtype)
        b_exp = _pad_axis(params["b_exp"], 1, Cdw_p).astype(jnp.float32)

    # --- output-row tiling: bound the expanded-activation working set -------
    itemsize = jnp.dtype(compute_dtype).itemsize
    per_out_row = stride * Wp * Cdw_p * (itemsize + 2 * 4)   # h + acc/taps
    max_rows = max(1, (8 * 1024 * 1024) // per_out_row)
    if row_tile is None:
        row_tile = _pick_row_tile(Hout, max_rows)
    else:
        row_tile = _pick_row_tile(Hout, min(row_tile, Hout))
    n_row_tiles = Hout // row_tile
    tile_in_rows = row_tile * stride + (K - stride)

    kernel = _make_fused_mbconv_kernel(
        K=K, stride=stride, padding=padding, H=H, W=W, Hp=Hp, Wp=Wp,
        row_tile=row_tile, tile_in_rows=tile_in_rows, Wout=Wout,
        has_expand=inverted_bottleneck, has_shortcut=shortcut,
        compute_dtype=compute_dtype)

    # Input block stays whole-image (smallest tensor) with a constant index
    # over the row-tile axis, so it is fetched once per batch element.
    in_specs = [pl.BlockSpec((1, Hp, Wp, Cin_p), lambda b, t: (b, 0, 0, 0))]
    args = [xp]
    if inverted_bottleneck:
        in_specs += [pl.BlockSpec((Cin_p, Cdw_p), lambda b, t: (0, 0)),
                     pl.BlockSpec((1, Cdw_p), lambda b, t: (0, 0))]
        args += [w_exp, b_exp]
    in_specs += [pl.BlockSpec((K, K, Cdw_p), lambda b, t: (0, 0, 0)),
                 pl.BlockSpec((1, Cdw_p), lambda b, t: (0, 0)),
                 pl.BlockSpec((Cdw_p, Cout_p), lambda b, t: (0, 0)),
                 pl.BlockSpec((1, Cout_p), lambda b, t: (0, 0))]
    args += [w_dw, b_dw, w_proj, b_proj]

    out_spec = pl.BlockSpec((1, row_tile, Wout, Cout_p),
                            lambda b, t: (b, t, 0, 0))

    scratch_shapes = []
    if stride > 1:
        scratch_shapes.append(pltpu.VMEM((tile_in_rows, Wp, Cdw_p),
                                         jnp.float32))

    flops_per_img = (2 * K * K * Hout * Wout * Cdw
                     + 2 * Hout * Wout * Cdw * Cout
                     + (2 * Hp * Wp * Cin * Cdw if inverted_bottleneck else 0)
                     + (Hout * Wout * Cout if shortcut else 0))
    bytes_accessed = (xp.size * xp.dtype.itemsize
                      + B * Hout * Wout * Cout_p * jnp.dtype(x.dtype).itemsize
                      + sum(int(a.size) * a.dtype.itemsize for a in args[1:]))

    out = pl.pallas_call(
        kernel,
        out_shape=jax.ShapeDtypeStruct((B, Hout, Wout, Cout_p), x.dtype),
        grid_spec=pltpu.PrefetchScalarGridSpec(
            num_scalar_prefetch=0,
            grid=(B, n_row_tiles),
            in_specs=in_specs,
            out_specs=out_spec,
            scratch_shapes=tuple(scratch_shapes)),
        compiler_params=pltpu.CompilerParams(
            dimension_semantics=("parallel", "parallel"),
            vmem_limit_bytes=64 * 1024 * 1024),
        cost_estimate=pl.CostEstimate(flops=int(B * flops_per_img),
                                      transcendentals=0,
                                      bytes_accessed=int(bytes_accessed)),
    )(*args)
    return out[..., :Cout]


def mobile_inverted_residual_block(x_nchw, params, *, kernel_size, stride,
                                   padding, inverted_bottleneck, shortcut,
                                   compute_dtype=jnp.float32, row_tile=None):
    """NCHW wrapper matching the torch module; transposes at the boundary."""
    x = jnp.transpose(x_nchw, (0, 2, 3, 1))       # NCHW -> NHWC
    out = mbconv_block_nhwc(x, params, kernel_size=kernel_size, stride=stride,
                            padding=padding,
                            inverted_bottleneck=inverted_bottleneck,
                            shortcut=shortcut, compute_dtype=compute_dtype,
                            row_tile=row_tile)
    return jnp.transpose(out, (0, 3, 1, 2))       # NHWC -> NCHW


# ---------------------------------------------------------------------------
# Deterministic parameter init (shapes follow the torch Conv2d definitions).
# ---------------------------------------------------------------------------
def init_params(key, Cin, Cout, Cinv, K, inverted_bottleneck):
    ks = jax.random.split(key, 6)
    params = {}
    Cdw = Cinv if inverted_bottleneck else Cin
    if inverted_bottleneck:
        params["w_exp"] = 0.2 * jax.random.normal(ks[0], (Cin, Cinv), jnp.float32)
        params["b_exp"] = 0.1 * jax.random.normal(ks[1], (1, Cinv), jnp.float32)
    params["w_dw"] = 0.2 * jax.random.normal(ks[2], (K, K, Cdw), jnp.float32)
    params["b_dw"] = 0.1 * jax.random.normal(ks[3], (1, Cdw), jnp.float32)
    params["w_proj"] = 0.2 * jax.random.normal(ks[4], (Cdw, Cout), jnp.float32)
    params["b_proj"] = 0.1 * jax.random.normal(ks[5], (1, Cout), jnp.float32)
    return params


# ---------------------------------------------------------------------------
# Pure-JAX reference (lax convs, HIGHEST precision) for correctness checking.
# ---------------------------------------------------------------------------
def reference_forward(x_nchw, params, *, kernel_size, stride, padding,
                      inverted_bottleneck, shortcut):
    x = jnp.transpose(x_nchw, (0, 2, 3, 1))
    dn = ("NHWC", "HWIO", "NHWC")
    prec = jax.lax.Precision.HIGHEST
    h = x
    if inverted_bottleneck:
        h = jax.lax.conv_general_dilated(
            h, params["w_exp"][None, None], (1, 1), "VALID",
            dimension_numbers=dn, precision=prec) + params["b_exp"][0]
        h = jnp.clip(h, 0.0, 6.0)
    Cdw = h.shape[-1]
    h = jax.lax.conv_general_dilated(
        h, params["w_dw"][:, :, None, :], (stride, stride),
        [(padding, padding), (padding, padding)],
        dimension_numbers=dn, feature_group_count=Cdw,
        precision=prec) + params["b_dw"][0]
    h = jnp.clip(h, 0.0, 6.0)
    h = jax.lax.conv_general_dilated(
        h, params["w_proj"][None, None], (1, 1), "VALID",
        dimension_numbers=dn, precision=prec) + params["b_proj"][0]
    if shortcut:
        h = h + x
    return jnp.transpose(h, (0, 3, 1, 2))


def _run_and_check(cfg_name, key, *, B, Cin, H, W, Cout, Cinv, K, stride,
                   padding, inverted_bottleneck, shortcut,
                   compute_dtype=jnp.float32, row_tile=None,
                   rtol=2e-3, atol=2e-3):
    kx, kp = jax.random.split(key)
    x = jax.random.normal(kx, (B, Cin, H, W), jnp.float32)
    params = init_params(kp, Cin, Cout, Cinv, K, inverted_bottleneck)

    out = mobile_inverted_residual_block(
        x, params, kernel_size=K, stride=stride, padding=padding,
        inverted_bottleneck=inverted_bottleneck, shortcut=shortcut,
        compute_dtype=compute_dtype, row_tile=row_tile)
    out = jax.block_until_ready(out)

    ref = jax.block_until_ready(reference_forward(
        x, params, kernel_size=K, stride=stride, padding=padding,
        inverted_bottleneck=inverted_bottleneck, shortcut=shortcut))

    if out.shape != ref.shape:
        raise AssertionError(f"{cfg_name}: shape {out.shape} vs {ref.shape}")
    if not jnp.allclose(out, ref, rtol=rtol, atol=atol):
        raise AssertionError(
            f"{cfg_name}: mismatch, max err={jnp.max(jnp.abs(out - ref))}")


if __name__ == "__main__":
    key = jax.random.PRNGKey(0)
    k1, k2, k3, k4 = jax.random.split(key, 4)

    # Config 1: inverted bottleneck + residual shortcut (canonical MBConv),
    # forced 4-row output tiles to exercise the row-tiled grid + fused residual.
    _run_and_check("mbconv_inv_shortcut", k1,
                   B=2, Cin=4, H=16, W=16, Cout=4, Cinv=16, K=3,
                   stride=1, padding=1,
                   inverted_bottleneck=True, shortcut=True, row_tile=4)

    # Config 2: no inverted bottleneck, no shortcut (the other torch branch).
    _run_and_check("mbconv_plain", k2,
                   B=2, Cin=8, H=16, W=16, Cout=16, Cinv=0, K=3,
                   stride=1, padding=1,
                   inverted_bottleneck=False, shortcut=False)

    # Config 3: stride-2 inverted bottleneck (exercises the strided-tap
    # depthwise path and a >128 expanded-channel count).
    _run_and_check("mbconv_inv_stride2", k3,
                   B=2, Cin=8, H=16, W=16, Cout=16, Cinv=144, K=3,
                   stride=2, padding=1,
                   inverted_bottleneck=True, shortcut=False, row_tile=4)

    # Config 4: bf16 compute path (v6e/v7x), f32 accumulators, looser tol.
    _run_and_check("mbconv_inv_shortcut_bf16", k4,
                   B=2, Cin=4, H=16, W=16, Cout=4, Cinv=16, K=3,
                   stride=1, padding=1,
                   inverted_bottleneck=True, shortcut=True, row_tile=4,
                   compute_dtype=jnp.bfloat16, rtol=5e-2, atol=5e-2)

    print("KERNEL_OK")
</pallas_src>

<mosaic_0001>
module attributes {stable_mosaic.version = 11 : i64} {
  func.func @kernel(%arg0: i32, %arg1: i32, %arg2: memref<1x18x18x128xf32, #tpu.memory_space<vmem>>, %arg3: memref<128x128xf32, #tpu.memory_space<vmem>>, %arg4: memref<1x128xf32, #tpu.memory_space<vmem>>, %arg5: memref<3x3x128xf32, #tpu.memory_space<vmem>>, %arg6: memref<1x128xf32, #tpu.memory_space<vmem>>, %arg7: memref<128x128xf32, #tpu.memory_space<vmem>>, %arg8: memref<1x128xf32, #tpu.memory_space<vmem>>, %arg9: memref<1x4x16x128xf32, #tpu.memory_space<vmem>>) attributes {dimension_semantics = [#tpu.dimension_semantics<parallel>, #tpu.dimension_semantics<parallel>], iteration_bounds = array<i64: 2, 4>, scalar_prefetch = 0 : i64, scratch_operands = 0 : i64, tpu.core_type = #tpu.core_type<tc>, window_params = [{transform_indices = @transform_0, window_bounds = array<i64: 1, 18, 18, 128>}, {pipeline_mode = #tpu.pipeline_mode<synchronous>, transform_indices = @transform_1, window_bounds = array<i64: 128, 128>}, {pipeline_mode = #tpu.pipeline_mode<synchronous>, transform_indices = @transform_2, window_bounds = array<i64: 1, 128>}, {pipeline_mode = #tpu.pipeline_mode<synchronous>, transform_indices = @transform_3, window_bounds = array<i64: 3, 3, 128>}, {pipeline_mode = #tpu.pipeline_mode<synchronous>, transform_indices = @transform_4, window_bounds = array<i64: 1, 128>}, {pipeline_mode = #tpu.pipeline_mode<synchronous>, transform_indices = @transform_5, window_bounds = array<i64: 128, 128>}, {pipeline_mode = #tpu.pipeline_mode<synchronous>, transform_indices = @transform_6, window_bounds = array<i64: 1, 128>}, {transform_indices = @transform_7, window_bounds = array<i64: 1, 4, 16, 128>}]} {
    %c4_i32 = arith.constant 4 : i32
    %0 = arith.muli %arg1, %c4_i32 : i32
    %1 = tpu.assume_multiple %0, 4 : i32
    %c0 = arith.constant 0 : index
    %2 = arith.index_cast %1 : i32 to index
    %c0_0 = arith.constant 0 : index
    %c0_1 = arith.constant 0 : index
    %3 = vector.load %arg2[%c0, %2, %c0_0, %c0_1] : memref<1x18x18x128xf32, #tpu.memory_space<vmem>>, vector<1x6x18x128xf32>
    %4 = vector.shape_cast %3 : vector<1x6x18x128xf32> to vector<6x18x128xf32>
    %5 = vector.shape_cast %4 : vector<6x18x128xf32> to vector<108x128xf32>
    %c0_2 = arith.constant 0 : index
    %c0_3 = arith.constant 0 : index
    %6 = vector.load %arg3[%c0_2, %c0_3] : memref<128x128xf32, #tpu.memory_space<vmem>>, vector<128x128xf32>
    %cst = arith.constant dense<0.000000e+00> : vector<108x128xf32>
    %7 = tpu.matmul %5, %6, %cst {dimension_numbers = #tpu.dot_dimension_numbers<[1], [0], [0], [1], [0, 0, 1, 1], [], []>} : vector<108x128xf32>, vector<128x128xf32>, vector<108x128xf32> -> vector<108x128xf32>
    %8 = vector.shape_cast %7 : vector<108x128xf32> to vector<6x18x128xf32>
    %c0_4 = arith.constant 0 : index
    %c0_5 = arith.constant 0 : index
    %9 = vector.load %arg4[%c0_4, %c0_5] : memref<1x128xf32, #tpu.memory_space<vmem>>, vector<1x128xf32>
    %10 = vector.shape_cast %9 : vector<1x128xf32> to vector<1x1x128xf32>
    %11 = vector.broadcast %10 : vector<1x1x128xf32> to vector<6x18x128xf32>
    %12 = arith.addf %8, %11 : vector<6x18x128xf32>
    %cst_6 = arith.constant 0.000000e+00 : f32
    %cst_7 = arith.constant 6.000000e+00 : f32
    %13 = vector.broadcast %cst_6 : f32 to vector<6x18x128xf32>
    %14 = arith.maximumf %13, %12 : vector<6x18x128xf32>
    %15 = vector.broadcast %cst_7 : f32 to vector<6x18x128xf32>
    %16 = arith.minimumf %15, %14 : vector<6x18x128xf32>
    %17 = tpu.iota {dimensions = array<i32: 0>} : vector<6x18x1xi32>
    %18 = vector.broadcast %1 : i32 to vector<6x18x1xi32>
    %19 = arith.addi %17, %18 : vector<6x18x1xi32>
    %20 = tpu.iota {dimensions = array<i32: 1>} : vector<6x18x1xi32>
    %c1_i32 = arith.constant 1 : i32
    %21 = vector.broadcast %c1_i32 : i32 to vector<6x18x1xi32>
    %22 = arith.cmpi sge, %19, %21 : vector<6x18x1xi32>
    %c17_i32 = arith.constant 17 : i32
    %23 = vector.broadcast %c17_i32 : i32 to vector<6x18x1xi32>
    %24 = arith.cmpi slt, %19, %23 : vector<6x18x1xi32>
    %25 = arith.andi %22, %24 : vector<6x18x1xi1>
    %c1_i32_8 = arith.constant 1 : i32
    %26 = vector.broadcast %c1_i32_8 : i32 to vector<6x18x1xi32>
    %27 = arith.cmpi sge, %20, %26 : vector<6x18x1xi32>
    %28 = arith.andi %25, %27 : vector<6x18x1xi1>
    %c17_i32_9 = arith.constant 17 : i32
    %29 = vector.broadcast %c17_i32_9 : i32 to vector<6x18x1xi32>
    %30 = arith.cmpi slt, %20, %29 : vector<6x18x1xi32>
    %31 = arith.andi %28, %30 : vector<6x18x1xi1>
    %cst_10 = arith.constant 0.000000e+00 : f32
    %32 = vector.shape_cast %31 : vector<6x18x1xi1> to vector<6x18x1xi1>
    %33 = vector.broadcast %32 : vector<6x18x1xi1> to vector<6x18x128xi1>
    %34 = vector.broadcast %cst_10 : f32 to vector<6x18x128xf32>
    %35 = arith.select %33, %16, %34 : vector<6x18x128xi1>, vector<6x18x128xf32>
    %c0_11 = arith.constant 0 : index
    %c0_12 = arith.constant 0 : index
    %c0_13 = arith.constant 0 : index
    %36 = vector.load %arg5[%c0_11, %c0_12, %c0_13] : memref<3x3x128xf32, #tpu.memory_space<vmem>>, vector<3x3x128xf32>
    %c0_14 = arith.constant 0 : index
    %c0_15 = arith.constant 0 : index
    %37 = vector.load %arg6[%c0_14, %c0_15] : memref<1x128xf32, #tpu.memory_space<vmem>>, vector<1x128xf32>
    %cst_16 = arith.constant 0.000000e+00 : f32
    %38 = vector.broadcast %cst_16 : f32 to vector<4x16x128xf32>
    %39 = vector.extract_strided_slice %35 {offsets = [0, 0, 0], sizes = [6, 16, 128], strides = [1, 1, 1]} : vector<6x18x128xf32> to vector<6x16x128xf32>
    %40 = vector.extract_strided_slice %35 {offsets = [0, 1, 0], sizes = [6, 16, 128], strides = [1, 1, 1]} : vector<6x18x128xf32> to vector<6x16x128xf32>
    %41 = vector.extract_strided_slice %35 {offsets = [0, 2, 0], sizes = [6, 16, 128], strides = [1, 1, 1]} : vector<6x18x128xf32> to vector<6x16x128xf32>
    %42 = vector.extract_strided_slice %39 {offsets = [0, 0, 0], sizes = [4, 16, 128], strides = [1, 1, 1]} : vector<6x16x128xf32> to vector<4x16x128xf32>
    %43 = vector.extract_strided_slice %36 {offsets = [0, 0, 0], sizes = [1, 1, 128], strides = [1, 1, 1]} : vector<3x3x128xf32> to vector<1x1x128xf32>
    %44 = vector.shape_cast %43 : vector<1x1x128xf32> to vector<128xf32>
    %45 = vector.shape_cast %44 : vector<128xf32> to vector<1x1x128xf32>
    %46 = vector.broadcast %45 : vector<1x1x128xf32> to vector<4x16x128xf32>
    %47 = arith.mulf %42, %46 : vector<4x16x128xf32>
    %48 = arith.addf %38, %47 : vector<4x16x128xf32>
    %49 = vector.extract_strided_slice %40 {offsets = [0, 0, 0], sizes = [4, 16, 128], strides = [1, 1, 1]} : vector<6x16x128xf32> to vector<4x16x128xf32>
    %50 = vector.extract_strided_slice %36 {offsets = [0, 1, 0], sizes = [1, 1, 128], strides = [1, 1, 1]} : vector<3x3x128xf32> to vector<1x1x128xf32>
    %51 = vector.shape_cast %50 : vector<1x1x128xf32> to vector<128xf32>
    %52 = vector.shape_cast %51 : vector<128xf32> to vector<1x1x128xf32>
    %53 = vector.broadcast %52 : vector<1x1x128xf32> to vector<4x16x128xf32>
    %54 = arith.mulf %49, %53 : vector<4x16x128xf32>
    %55 = arith.addf %48, %54 : vector<4x16x128xf32>
    %56 = vector.extract_strided_slice %41 {offsets = [0, 0, 0], sizes = [4, 16, 128], strides = [1, 1, 1]} : vector<6x16x128xf32> to vector<4x16x128xf32>
    %57 = vector.extract_strided_slice %36 {offsets = [0, 2, 0], sizes = [1, 1, 128], strides = [1, 1, 1]} : vector<3x3x128xf32> to vector<1x1x128xf32>
    %58 = vector.shape_cast %57 : vector<1x1x128xf32> to vector<128xf32>
    %59 = vector.shape_cast %58 : vector<128xf32> to vector<1x1x128xf32>
    %60 = vector.broadcast %59 : vector<1x1x128xf32> to vector<4x16x128xf32>
    %61 = arith.mulf %56, %60 : vector<4x16x128xf32>
    %62 = arith.addf %55, %61 : vector<4x16x128xf32>
    %63 = vector.extract_strided_slice %39 {offsets = [1, 0, 0], sizes = [4, 16, 128], strides = [1, 1, 1]} : vector<6x16x128xf32> to vector<4x16x128xf32>
    %64 = vector.extract_strided_slice %36 {offsets = [1, 0, 0], sizes = [1, 1, 128], strides = [1, 1, 1]} : vector<3x3x128xf32> to vector<1x1x128xf32>
    %65 = vector.shape_cast %64 : vector<1x1x128xf32> to vector<128xf32>
    %66 = vector.shape_cast %65 : vector<128xf32> to vector<1x1x128xf32>
    %67 = vector.broadcast %66 : vector<1x1x128xf32> to vector<4x16x128xf32>
    %68 = arith.mulf %63, %67 : vector<4x16x128xf32>
    %69 = arith.addf %62, %68 : vector<4x16x128xf32>
    %70 = vector.extract_strided_slice %40 {offsets = [1, 0, 0], sizes = [4, 16, 128], strides = [1, 1, 1]} : vector<6x16x128xf32> to vector<4x16x128xf32>
    %71 = vector.extract_strided_slice %36 {offsets = [1, 1, 0], sizes = [1, 1, 128], strides = [1, 1, 1]} : vector<3x3x128xf32> to vector<1x1x128xf32>
    %72 = vector.shape_cast %71 : vector<1x1x128xf32> to vector<128xf32>
    %73 = vector.shape_cast %72 : vector<128xf32> to vector<1x1x128xf32>
    %74 = vector.broadcast %73 : vector<1x1x128xf32> to vector<4x16x128xf32>
    %75 = arith.mulf %70, %74 : vector<4x16x128xf32>
    %76 = arith.addf %69, %75 : vector<4x16x128xf32>
    %77 = vector.extract_strided_slice %41 {offsets = [1, 0, 0], sizes = [4, 16, 128], strides = [1, 1, 1]} : vector<6x16x128xf32> to vector<4x16x128xf32>
    %78 = vector.extract_strided_slice %36 {offsets = [1, 2, 0], sizes = [1, 1, 128], strides = [1, 1, 1]} : vector<3x3x128xf32> to vector<1x1x128xf32>
    %79 = vector.shape_cast %78 : vector<1x1x128xf32> to vector<128xf32>
    %80 = vector.shape_cast %79 : vector<128xf32> to vector<1x1x128xf32>
    %81 = vector.broadcast %80 : vector<1x1x128xf32> to vector<4x16x128xf32>
    %82 = arith.mulf %77, %81 : vector<4x16x128xf32>
    %83 = arith.addf %76, %82 : vector<4x16x128xf32>
    %84 = vector.extract_strided_slice %39 {offsets = [2, 0, 0], sizes = [4, 16, 128], strides = [1, 1, 1]} : vector<6x16x128xf32> to vector<4x16x128xf32>
    %85 = vector.extract_strided_slice %36 {offsets = [2, 0, 0], sizes = [1, 1, 128], strides = [1, 1, 1]} : vector<3x3x128xf32> to vector<1x1x128xf32>
    %86 = vector.shape_cast %85 : vector<1x1x128xf32> to vector<128xf32>
    %87 = vector.shape_cast %86 : vector<128xf32> to vector<1x1x128xf32>
    %88 = vector.broadcast %87 : vector<1x1x128xf32> to vector<4x16x128xf32>
    %89 = arith.mulf %84, %88 : vector<4x16x128xf32>
    %90 = arith.addf %83, %89 : vector<4x16x128xf32>
    %91 = vector.extract_strided_slice %40 {offsets = [2, 0, 0], sizes = [4, 16, 128], strides = [1, 1, 1]} : vector<6x16x128xf32> to vector<4x16x128xf32>
    %92 = vector.extract_strided_slice %36 {offsets = [2, 1, 0], sizes = [1, 1, 128], strides = [1, 1, 1]} : vector<3x3x128xf32> to vector<1x1x128xf32>
    %93 = vector.shape_cast %92 : vector<1x1x128xf32> to vector<128xf32>
    %94 = vector.shape_cast %93 : vector<128xf32> to vector<1x1x128xf32>
    %95 = vector.broadcast %94 : vector<1x1x128xf32> to vector<4x16x128xf32>
    %96 = arith.mulf %91, %95 : vector<4x16x128xf32>
    %97 = arith.addf %90, %96 : vector<4x16x128xf32>
    %98 = vector.extract_strided_slice %41 {offsets = [2, 0, 0], sizes = [4, 16, 128], strides = [1, 1, 1]} : vector<6x16x128xf32> to vector<4x16x128xf32>
    %99 = vector.extract_strided_slice %36 {offsets = [2, 2, 0], sizes = [1, 1, 128], strides = [1, 1, 1]} : vector<3x3x128xf32> to vector<1x1x128xf32>
    %100 = vector.shape_cast %99 : vector<1x1x128xf32> to vector<128xf32>
    %101 = vector.shape_cast %100 : vector<128xf32> to vector<1x1x128xf32>
    %102 = vector.broadcast %101 : vector<1x1x128xf32> to vector<4x16x128xf32>
    %103 = arith.mulf %98, %102 : vector<4x16x128xf32>
    %104 = arith.addf %97, %103 : vector<4x16x128xf32>
    %105 = vector.shape_cast %37 : vector<1x128xf32> to vector<1x1x128xf32>
    %106 = vector.broadcast %105 : vector<1x1x128xf32> to vector<4x16x128xf32>
    %107 = arith.addf %104, %106 : vector<4x16x128xf32>
    %cst_17 = arith.constant 0.000000e+00 : f32
    %cst_18 = arith.constant 6.000000e+00 : f32
    %108 = vector.broadcast %cst_17 : f32 to vector<4x16x128xf32>
    %109 = arith.maximumf %108, %107 : vector<4x16x128xf32>
    %110 = vector.broadcast %cst_18 : f32 to vector<4x16x128xf32>
    %111 = arith.minimumf %110, %109 : vector<4x16x128xf32>
    %112 = vector.shape_cast %111 : vector<4x16x128xf32> to vector<64x128xf32>
    %c0_19 = arith.constant 0 : index
    %c0_20 = arith.constant 0 : index
    %113 = vector.load %arg7[%c0_19, %c0_20] : memref<128x128xf32, #tpu.memory_space<vmem>>, vector<128x128xf32>
    %cst_21 = arith.constant dense<0.000000e+00> : vector<64x128xf32>
    %114 = tpu.matmul %112, %113, %cst_21 {dimension_numbers = #tpu.dot_dimension_numbers<[1], [0], [0], [1], [0, 0, 1, 1], [], []>} : vector<64x128xf32>, vector<128x128xf32>, vector<64x128xf32> -> vector<64x128xf32>
    %115 = vector.shape_cast %114 : vector<64x128xf32> to vector<4x16x128xf32>
    %c0_22 = arith.constant 0 : index
    %c0_23 = arith.constant 0 : index
    %116 = vector.load %arg8[%c0_22, %c0_23] : memref<1x128xf32, #tpu.memory_space<vmem>>, vector<1x128xf32>
    %117 = vector.shape_cast %116 : vector<1x128xf32> to vector<1x1x128xf32>
    %118 = vector.broadcast %117 : vector<1x1x128xf32> to vector<4x16x128xf32>
    %119 = arith.addf %115, %118 : vector<4x16x128xf32>
    %120 = vector.extract_strided_slice %4 {offsets = [1, 1, 0], sizes = [4, 16, 128], strides = [1, 1, 1]} : vector<6x18x128xf32> to vector<4x16x128xf32>
    %121 = arith.addf %119, %120 : vector<4x16x128xf32>
    %c0_24 = arith.constant 0 : index
    %c0_25 = arith.constant 0 : index
    %c0_26 = arith.constant 0 : index
    %c0_27 = arith.constant 0 : index
    %122 = vector.load %arg9[%c0_24, %c0_25, %c0_26, %c0_27] : memref<1x4x16x128xf32, #tpu.memory_space<vmem>>, vector<1x4x16x128xf32>
    %123 = vector.shape_cast %122 : vector<1x4x16x128xf32> to vector<4x16x128xf32>
    %124 = vector.shape_cast %121 : vector<4x16x128xf32> to vector<1x4x16x128xf32>
    tpu.vector_store %arg9[%c0_24, %c0_25, %c0_26, %c0_27], %124 {strides = array<i32>} : memref<1x4x16x128xf32, #tpu.memory_space<vmem>>, vector<1x4x16x128xf32>,
    return
  }
  func.func @transform_0(%arg0: i32, %arg1: i32) -> (i32, i32, i32, i32) {
    %c0_i32 = arith.constant 0 : i32
    %c0_i32_0 = arith.constant 0 : i32
    %c0_i32_1 = arith.constant 0 : i32
    %c0_i32_2 = arith.constant 0 : i32
    return %arg0, %c0_i32, %c0_i32_0, %c0_i32_1 : i32, i32, i32, i32
  }
  func.func @transform_1(%arg0: i32, %arg1: i32) -> (i32, i32) {
    %c0_i32 = arith.constant 0 : i32
    %c0_i32_0 = arith.constant 0 : i32
    %c0_i32_1 = arith.constant 0 : i32
    return %c0_i32, %c0_i32_0 : i32, i32
  }
  func.func @transform_2(%arg0: i32, %arg1: i32) -> (i32, i32) {
    %c0_i32 = arith.constant 0 : i32
    %c0_i32_0 = arith.constant 0 : i32
    %c0_i32_1 = arith.constant 0 : i32
    return %c0_i32, %c0_i32_0 : i32, i32
  }
  func.func @transform_3(%arg0: i32, %arg1: i32) -> (i32, i32, i32) {
    %c0_i32 = arith.constant 0 : i32
    %c0_i32_0 = arith.constant 0 : i32
    %c0_i32_1 = arith.constant 0 : i32
    %c0_i32_2 = arith.constant 0 : i32
    return %c0_i32, %c0_i32_0, %c0_i32_1 : i32, i32, i32
  }
  func.func @transform_4(%arg0: i32, %arg1: i32) -> (i32, i32) {
    %c0_i32 = arith.constant 0 : i32
    %c0_i32_0 = arith.constant 0 : i32
    %c0_i32_1 = arith.constant 0 : i32
    return %c0_i32, %c0_i32_0 : i32, i32
  }
  func.func @transform_5(%arg0: i32, %arg1: i32) -> (i32, i32) {
    %c0_i32 = arith.constant 0 : i32
    %c0_i32_0 = arith.constant 0 : i32
    %c0_i32_1 = arith.constant 0 : i32
    return %c0_i32, %c0_i32_0 : i32, i32
  }
  func.func @transform_6(%arg0: i32, %arg1: i32) -> (i32, i32) {
    %c0_i32 = arith.constant 0 : i32
    %c0_i32_0 = arith.constant 0 : i32
    %c0_i32_1 = arith.constant 0 : i32
    return %c0_i32, %c0_i32_0 : i32, i32
  }
  func.func @transform_7(%arg0: i32, %arg1: i32) -> (i32, i32, i32, i32) {
    %c0_i32 = arith.constant 0 : i32
    %c0_i32_0 = arith.constant 0 : i32
    %c0_i32_1 = arith.constant 0 : i32
    return %arg0, %arg1, %c0_i32, %c0_i32_0 : i32, i32, i32, i32
  }
}

</mosaic_0001>

<llo_original>
// kernel: tpu_custom_call.1
$region0: #{tpu_custom_call.1}
  #allocation0 [shape = 'u32[]', space=smem, size = 0x4, offset = 0x4, fixed_abs, tag = 'smem constant byte address 0x4 - core index']
  #allocation1 [shape = 'u32[144,128]{1,0:T(1,128)}', space=vmem, size = 0x12000, scoped, tag = 'internal scratch']
  %s0 = inlined_call_operand.hbm [shape: f32[2,18,18,128], index: 0, kind: input, shape index: {}]
  %s1 = inlined_call_operand.hbm [shape: f32[128,128], index: 1, kind: input, shape index: {}]
  %s2 = inlined_call_operand.hbm [shape: f32[1,128], index: 2, kind: input, shape index: {}]
  %s3 = inlined_call_operand.hbm [shape: f32[3,3,128], index: 3, kind: input, shape index: {}]
  %s4 = inlined_call_operand.hbm [shape: f32[1,128], index: 4, kind: input, shape index: {}]
  %s5 = inlined_call_operand.hbm [shape: f32[128,128], index: 5, kind: input, shape index: {}]
  %s6 = inlined_call_operand.hbm [shape: f32[1,128], index: 6, kind: input, shape index: {}]
  %s7 = inlined_call_operand.hbm [shape: f32[2,16,16,128], index: 7, kind: output, shape index: {}]
  %s8 = sld [smem:[#allocation0]]
  $region89: #{tpu_custom_call.1} parent=0
    _
  %s10 = ssub.s32 1, %s8
  %s11 = scalar_select 0, %s10, %s8
  $region1: #{tpu_custom_call.1} parent=0
    #allocation2 [shape = 'u8[442368]{0}', space=vmem, size = 0x6c000, scoped, tag = 'input window, operand 0']
    #allocation3 [shape = 's32[2]{0}', space=sflag, size = 0x8, scoped, tag = 'scoped memory for tpu_custom_call.1']
    #allocation4 [shape = 's32[2]{0}', space=sflag, size = 0x8, scoped, tag = 'scoped memory for tpu_custom_call.1']
    #allocation5 [shape = 'u8[65536]{0}', space=vmem, size = 0x10000, scoped, tag = 'input window, operand 1, single buffered']
    #allocation6 [shape = 's32[1]{0}', space=sflag, size = 0x4, scoped, tag = 'scoped memory for tpu_custom_call.1']
    #allocation7 [shape = 'u8[512]{0}', space=vmem, size = 0x400, scoped, tag = 'input window, operand 2, single buffered']
    #allocation8 [shape = 'u8[6144]{0}', space=vmem, size = 0x1800, scoped, tag = 'input window, operand 3, single buffered']
    #allocation9 [shape = 's32[1]{0}', space=sflag, size = 0x4, scoped, tag = 'scoped memory for tpu_custom_call.1']
    #allocation10 [shape = 'u8[512]{0}', space=vmem, size = 0x400, scoped, tag = 'input window, operand 4, single buffered']
    #allocation11 [shape = 'u8[65536]{0}', space=vmem, size = 0x10000, scoped, tag = 'input window, operand 5, single buffered']
    #allocation12 [shape = 's32[1]{0}', space=sflag, size = 0x4, scoped, tag = 'scoped memory for tpu_custom_call.1']
    #allocation13 [shape = 'u8[512]{0}', space=vmem, size = 0x400, scoped, tag = 'input window, operand 6, single buffered']
    #allocation14 [shape = 'u8[65536]{0}', space=vmem, size = 0x10000, scoped, tag = 'output window, operand 0']
    %12 = vsyncpa [#allocation3], 0
    %s13 = scalar_lea.sflag [#allocation3], 1
    %14 = vsyncpa %s13, 0
    %15 = vsyncpa [#allocation6], 0
    %16 = vsyncpa [#allocation9], 0
    %17 = vsyncpa [#allocation12], 0
    %18 = vsyncpa [#allocation4], 0
    %s19 = scalar_lea.sflag [#allocation4], 1
    %20 = vsyncpa %s19, 0
    loop: start=0, step=1, limit=10
    $region2: #{tpu_custom_call.1} parent=1 // loop_pre_header
      _
    $region3: #{tpu_custom_call.1} parent=1 // loop_header
      %s22 = sphi 0, %s26
      %p23 = scmp.ge.s32.totalorder %s22, 10
      %s29 = sphi 0, %s41
      %s30 = sphi 0, %s37
      %s31 = sphi 0, %s29
      %s32 = sphi 0, %s30
      %s33 = sphi 0, %s31
      %s34 = sphi 0, %s32
      %s44 = sphi 0, %s46
      %s47 = sphi 0, %s44
      %s48 = sphi 0, %s47
      %s64 = sphi 0, %s48
      %s68 = sphi 0, %s68
      %s70 = sphi 0, %s68
      %s71 = sphi 0, %s70
      %s85 = sphi 0, %s71
      %s89 = sphi 0, %s89
      %s91 = sphi 0, %s89
      %s92 = sphi 0, %s91
      %s106 = sphi 0, %s92
      %s110 = sphi 0, %s110
      %s112 = sphi 0, %s110
      %s113 = sphi 0, %s112
      %s127 = sphi 0, %s113
      %s131 = sphi 0, %s131
      %s133 = sphi 0, %s131
      %s134 = sphi 0, %s133
      %s148 = sphi 0, %s134
      %s152 = sphi 0, %s152
      %s154 = sphi 0, %s152
      %s155 = sphi 0, %s154
      %s169 = sphi 0, %s155
      %s173 = sphi 0, %s173
      %s175 = sphi 0, %s173
      %s176 = sphi 0, %s175
      %s190 = sphi 0, %s176
      %s198 = sphi 0, %s200
      %s201 = sphi 0, %s198
      %s202 = sphi 0, %s201
      %s218 = sphi 0, %s202
    $region4: #{tpu_custom_call.1} parent=1 // loop_header_branch
      %25 = sbr.rel (%p23) target = $region8
    $region5: #{tpu_custom_call.1} parent=1 // loop_body
      %s27 = ssub.s32 %s22, 1
      %s28 = ssub.s32 %s22, 2
      %s35 = sadd.s32 1, %s30
      %p36 = scmp.ge.s32.totalorder %s35, 4
      %s37 = scalar_select %p36, 0, %s35
      %s38 = sadd.s32 1, %s29
      %s39 = scalar_select %p36, %s38, %s29
      %p40 = scmp.ge.s32.totalorder %s39, 2
      %s41 = scalar_select %p40, 0, %s39
      %s42 = ssub.s32 %s29, %s41
      %p43 = scmp.eq.s32.totalorder %s42, 0
      %s45 = sadd.s32 %s44, 1
      %s46 = scalar_select %p43, %s44, %s45
      %p49 = pneg %p43
      %p50 = scmp.eq.s32.totalorder %s22, 7
      %p51 = por %p49, %p50
      %p52 = scmp.ne.s32.totalorder %s44, %s47
      %p53 = scmp.eq.s32.totalorder %s22, 0
      %p54 = por %p52, %p53
      %p55 = scmp.ne.s32.totalorder %s44, %s47
      %p56 = scmp.eq.s32.totalorder %s27, 7
      %p57 = por %p55, %p56
      %p58 = scmp.ne.s32.totalorder %s47, %s48
      %p59 = scmp.eq.s32.totalorder %s27, 0
      %p60 = por %p58, %p59
      %p61 = scmp.ne.s32.totalorder %s47, %s48
      %p62 = scmp.eq.s32.totalorder %s28, 7
      %p63 = por %p61, %p62
      %p65 = scmp.ne.s32.totalorder %s48, %s64
      %p66 = scmp.eq.s32.totalorder %s28, 0
      %p67 = por %p65, %p66
      %s69 = sadd.s32 %s68, 1
      %p72 = scmp.eq.s32.totalorder %s22, 7
      %p73 = scmp.ne.s32.totalorder %s68, %s70
      %p74 = scmp.eq.s32.totalorder %s22, 0
      %p75 = por %p73, %p74
      %p76 = scmp.ne.s32.totalorder %s68, %s70
      %p77 = scmp.eq.s32.totalorder %s27, 7
      %p78 = por %p76, %p77
      %p79 = scmp.ne.s32.totalorder %s70, %s71
      %p80 = scmp.eq.s32.totalorder %s27, 0
      %p81 = por %p79, %p80
      %p82 = scmp.ne.s32.totalorder %s70, %s71
      %p83 = scmp.eq.s32.totalorder %s28, 7
      %p84 = por %p82, %p83
      %p86 = scmp.ne.s32.totalorder %s71, %s85
      %p87 = scmp.eq.s32.totalorder %s28, 0
      %p88 = por %p86, %p87
      %s90 = sadd.s32 %s89, 1
      %p93 = scmp.eq.s32.totalorder %s22, 7
      %p94 = scmp.ne.s32.totalorder %s89, %s91
      %p95 = scmp.eq.s32.totalorder %s22, 0
      %p96 = por %p94, %p95
      %p97 = scmp.ne.s32.totalorder %s89, %s91
      %p98 = scmp.eq.s32.totalorder %s27, 7
      %p99 = por %p97, %p98
      %p100 = scmp.ne.s32.totalorder %s91, %s92
      %p101 = scmp.eq.s32.totalorder %s27, 0
      %p102 = por %p100, %p101
      %p103 = scmp.ne.s32.totalorder %s91, %s92
      %p104 = scmp.eq.s32.totalorder %s28, 7
      %p105 = por %p103, %p104
      %p107 = scmp.ne.s32.totalorder %s92, %s106
      %p108 = scmp.eq.s32.totalorder %s28, 0
      %p109 = por %p107, %p108
      %s111 = sadd.s32 %s110, 1
      %p114 = scmp.eq.s32.totalorder %s22, 7
      %p115 = scmp.ne.s32.totalorder %s110, %s112
      %p116 = scmp.eq.s32.totalorder %s22, 0
      %p117 = por %p115, %p116
      %p118 = scmp.ne.s32.totalorder %s110, %s112
      %p119 = scmp.eq.s32.totalorder %s27, 7
      %p120 = por %p118, %p119
      %p121 = scmp.ne.s32.totalorder %s112, %s113
      %p122 = scmp.eq.s32.totalorder %s27, 0
      %p123 = por %p121, %p122
      %p124 = scmp.ne.s32.totalorder %s112, %s113
      %p125 = scmp.eq.s32.totalorder %s28, 7
      %p126 = por %p124, %p125
      %p128 = scmp.ne.s32.totalorder %s113, %s127
      %p129 = scmp.eq.s32.totalorder %s28, 0
      %p130 = por %p128, %p129
      %s132 = sadd.s32 %s131, 1
      %p135 = scmp.eq.s32.totalorder %s22, 7
      %p136 = scmp.ne.s32.totalorder %s131, %s133
      %p137 = scmp.eq.s32.totalorder %s22, 0
      %p138 = por %p136, %p137
      %p139 = scmp.ne.s32.totalorder %s131, %s133
      %p140 = scmp.eq.s32.totalorder %s27, 7
      %p141 = por %p139, %p140
      %p142 = scmp.ne.s32.totalorder %s133, %s134
      %p143 = scmp.eq.s32.totalorder %s27, 0
      %p144 = por %p142, %p143
      %p145 = scmp.ne.s32.totalorder %s133, %s134
      %p146 = scmp.eq.s32.totalorder %s28, 7
      %p147 = por %p145, %p146
      %p149 = scmp.ne.s32.totalorder %s134, %s148
      %p150 = scmp.eq.s32.totalorder %s28, 0
      %p151 = por %p149, %p150
      %s153 = sadd.s32 %s152, 1
      %p156 = scmp.eq.s32.totalorder %s22, 7
      %p157 = scmp.ne.s32.totalorder %s152, %s154
      %p158 = scmp.eq.s32.totalorder %s22, 0
      %p159 = por %p157, %p158
      %p160 = scmp.ne.s32.totalorder %s152, %s154
      %p161 = scmp.eq.s32.totalorder %s27, 7
      %p162 = por %p160, %p161
      %p163 = scmp.ne.s32.totalorder %s154, %s155
      %p164 = scmp.eq.s32.totalorder %s27, 0
      %p165 = por %p163, %p164
      %p166 = scmp.ne.s32.totalorder %s154, %s155
      %p167 = scmp.eq.s32.totalorder %s28, 7
      %p168 = por %p166, %p167
      %p170 = scmp.ne.s32.totalorder %s155, %s169
      %p171 = scmp.eq.s32.totalorder %s28, 0
      %p172 = por %p170, %p171
      %s174 = sadd.s32 %s173, 1
      %p177 = scmp.eq.s32.totalorder %s22, 7
      %p178 = scmp.ne.s32.totalorder %s173, %s175
      %p179 = scmp.eq.s32.totalorder %s22, 0
      %p180 = por %p178, %p179
      %p181 = scmp.ne.s32.totalorder %s173, %s175
      %p182 = scmp.eq.s32.totalorder %s27, 7
      %p183 = por %p181, %p182
      %p184 = scmp.ne.s32.totalorder %s175, %s176
      %p185 = scmp.eq.s32.totalorder %s27, 0
      %p186 = por %p184, %p185
      %p187 = scmp.ne.s32.totalorder %s175, %s176
      %p188 = scmp.eq.s32.totalorder %s28, 7
      %p189 = por %p187, %p188
      %p191 = scmp.ne.s32.totalorder %s176, %s190
      %p192 = scmp.eq.s32.totalorder %s28, 0
      %p193 = por %p191, %p192
      %s194 = ssub.s32 %s29, %s41
      %s195 = ssub.s32 %s30, %s37
      %s196 = sor.u32 %s194, %s195
      %p197 = scmp.eq.s32.totalorder %s196, 0
      %s199 = sadd.s32 %s198, 1
      %s200 = scalar_select %p197, %s198, %s199
      %p203 = pneg %p197
      %p204 = scmp.eq.s32.totalorder %s22, 7
      %p205 = por %p203, %p204
      %p206 = scmp.ne.s32.totalorder %s198, %s201
      %p207 = scmp.eq.s32.totalorder %s22, 0
      %p208 = por %p206, %p207
      %p209 = scmp.ne.s32.totalorder %s198, %s201
      %p210 = scmp.eq.s32.totalorder %s27, 7
      %p211 = por %p209, %p210
      %p212 = scmp.ne.s32.totalorder %s201, %s202
      %p213 = scmp.eq.s32.totalorder %s27, 0
      %p214 = por %p212, %p213
      %p215 = scmp.ne.s32.totalorder %s201, %s202
      %p216 = scmp.eq.s32.totalorder %s28, 7
      %p217 = por %p215, %p216
      %p219 = scmp.ne.s32.totalorder %s202, %s218
      %p220 = scmp.eq.s32.totalorder %s28, 0
      %p221 = por %p219, %p220
      %p222 = scmp.le.s32.totalorder 1, %s22
      %p223 = scmp.lt.s32.totalorder %s22, 9
      %p224 = pnand %p222, %p223
      %p225 = pneg %p224
      // Predicated region
      $region9: #{tpu_custom_call.1} parent=5 // pred_check
        _
      $region10: #{tpu_custom_call.1} parent=5 // pred_check_branch
        %227 = sbr.rel (%p224) target = $region12
      $region11: #{tpu_custom_call.1} parent=5 // pred_region
        %s228 = ssub.s32 %s22, 1
        // Predicated region
        $region13: #{tpu_custom_call.1} parent=11 // pred_check
          %p229 = pneg %p81
        $region14: #{tpu_custom_call.1} parent=11 // pred_check_branch
          %231 = sbr.rel (%p229) target = $region16
        $region15: #{tpu_custom_call.1} parent=11 // pred_region
          %s233 = ssub.s32 2048, 2048
          %234 = vsyncadd [#allocation6], %s233
          %s235 = sshll.u32 [#allocation5], 4
          %s236 = int_to_ptr.vmem [resolvable:$true] %s235
          %241 = dma.hbm_to_vmem [thread:$0]  %s1, 2048, %s236, [#allocation6], 128, 128, 8
        $region16: #{tpu_custom_call.1} parent=11 // pred_fallthru
          _
        // Predicated region
        $region17: #{tpu_custom_call.1} parent=11 // pred_check
          %p242 = pneg %p102
        $region18: #{tpu_custom_call.1} parent=11 // pred_check_branch
          %244 = sbr.rel (%p242) target = $region20
        $region19: #{tpu_custom_call.1} parent=11 // pred_region
          %s246 = ssub.s32 16, 16
          %247 = vsyncadd [#allocation6], %s246
          %s249 = sshll.u32 [#allocation7], 4
          %s250 = int_to_ptr.vmem [resolvable:$true] %s249
          %252 = dma.hbm_to_vmem [thread:$0]  %s2, 16, %s250, [#allocation6]
        $region20: #{tpu_custom_call.1} parent=11 // pred_fallthru
          _
        // Predicated region
        $region21: #{tpu_custom_call.1} parent=11 // pred_check
          %p253 = pneg %p123
        $region22: #{tpu_custom_call.1} parent=11 // pred_check_branch
          %255 = sbr.rel (%p253) target = $region24
        $region23: #{tpu_custom_call.1} parent=11 // pred_region
          %s257 = ssub.s32 192, 192
          %258 = vsyncadd [#allocation9], %s257
          %s259 = sshll.u32 [#allocation8], 4
          %s260 = int_to_ptr.vmem [resolvable:$true] %s259
          %265 = dma.hbm_to_vmem [thread:$0]  %s3, 192, %s260, [#allocation9], 64, 64, 4
        $region24: #{tpu_custom_call.1} parent=11 // pred_fallthru
          _
        // Predicated region
        $region25: #{tpu_custom_call.1} parent=11 // pred_check
          %p266 = pneg %p144
        $region26: #{tpu_custom_call.1} parent=11 // pred_check_branch
          %268 = sbr.rel (%p266) target = $region28
        $region27: #{tpu_custom_call.1} parent=11 // pred_region
          %s270 = ssub.s32 16, 16
          %271 = vsyncadd [#allocation9], %s270
          %s273 = sshll.u32 [#allocation10], 4
          %s274 = int_to_ptr.vmem [resolvable:$true] %s273
          %276 = dma.hbm_to_vmem [thread:$0]  %s4, 16, %s274, [#allocation9]
        $region28: #{tpu_custom_call.1} parent=11 // pred_fallthru
          _
        // Predicated region
        $region29: #{tpu_custom_call.1} parent=11 // pred_check
          %p277 = pneg %p165
        $region30: #{tpu_custom_call.1} parent=11 // pred_check_branch
          %279 = sbr.rel (%p277) target = $region32
        $region31: #{tpu_custom_call.1} parent=11 // pred_region
          %s281 = ssub.s32 2048, 2048
          %282 = vsyncadd [#allocation12], %s281
          %s283 = sshll.u32 [#allocation11], 4
          %s284 = int_to_ptr.vmem [resolvable:$true] %s283
          %289 = dma.hbm_to_vmem [thread:$0]  %s5, 2048, %s284, [#allocation12], 128, 128, 8
        $region32: #{tpu_custom_call.1} parent=11 // pred_fallthru
          _
        // Predicated region
        $region33: #{tpu_custom_call.1} parent=11 // pred_check
          %p290 = pneg %p186
        $region34: #{tpu_custom_call.1} parent=11 // pred_check_branch
          %292 = sbr.rel (%p290) target = $region36
        $region35: #{tpu_custom_call.1} parent=11 // pred_region
          %s294 = ssub.s32 16, 16
          %295 = vsyncadd [#allocation12], %s294
          %s297 = sshll.u32 [#allocation13], 4
          %s298 = int_to_ptr.vmem [resolvable:$true] %s297
          %300 = dma.hbm_to_vmem [thread:$0]  %s6, 16, %s298, [#allocation12]
        $region36: #{tpu_custom_call.1} parent=11 // pred_fallthru
          _
      $region12: #{tpu_custom_call.1} parent=5 // pred_fallthru
        _
      %p301 = scmp.lt.s32.totalorder %s22, 8
      // Predicated region
      $region37: #{tpu_custom_call.1} parent=5 // pred_check
        %p302 = pneg %p301
      $region38: #{tpu_custom_call.1} parent=5 // pred_check_branch
        %304 = sbr.rel (%p302) target = $region40
      $region39: #{tpu_custom_call.1} parent=5 // pred_region
        // Predicated region
        $region41: #{tpu_custom_call.1} parent=39 // pred_check
          %p305 = pneg %p54
        $region42: #{tpu_custom_call.1} parent=39 // pred_check_branch
          %307 = sbr.rel (%p305) target = $region44
        $region43: #{tpu_custom_call.1} parent=39 // pred_region
          %s308 = sand.u32 %s44, 1
          %s309 = scalar_lea.sflag [#allocation3], %s308
          %s310 = sand.u32 %s44, 1
          %s311 = smul.addr %s310, 432
          %s312 = scalar_lea.vmem [#allocation2], %s311
          %s314 = ssub.s32 6912, 6912
          %315 = vsyncadd %s309, %s314
          %s316 = smul.addr %s29, 54
          %s317 = smul.addr %s316, 128
          %s318 = scalar_lea.hbm %s0, %s317
          %s319 = sshll.u32 %s312, 4
          %s320 = int_to_ptr.vmem [resolvable:$true] %s319
          %325 = dma.hbm_to_vmem [thread:$0]  %s318, 6912, %s320, %s309, 128, 128, 8
        $region44: #{tpu_custom_call.1} parent=39 // pred_fallthru
          _
      $region40: #{tpu_custom_call.1} parent=5 // pred_fallthru
        _
      %p326 = scmp.le.s32.totalorder 1, %s22
      %p327 = scmp.lt.s32.totalorder %s22, 9
      %p328 = pnand %p326, %p327
      %p329 = pneg %p328
      // Predicated region
      $region45: #{tpu_custom_call.1} parent=5 // pred_check
        _
      $region46: #{tpu_custom_call.1} parent=5 // pred_check_branch
        %331 = sbr.rel (%p328) target = $region48
      $region47: #{tpu_custom_call.1} parent=5 // pred_region
        %s332 = ssub.s32 %s22, 1
        %s333 = sand.u32 %s47, 1
        %s334 = scalar_lea.sflag [#allocation3], %s333
        %s335 = sand.u32 %s47, 1
        %s336 = smul.addr %s335, 432
        %s337 = scalar_lea.vmem [#allocation2], %s336
        // Predicated region
        $region49: #{tpu_custom_call.1} parent=47 // pred_check
          %p338 = pneg %p60
        $region50: #{tpu_custom_call.1} parent=47 // pred_check_branch
          %340 = sbr.rel (%p338) target = $region52
        $region51: #{tpu_custom_call.1} parent=47 // pred_region
          %341 = dma.done %s334, 6912
        $region52: #{tpu_custom_call.1} parent=47 // pred_fallthru
          _
        // Predicated region
        $region53: #{tpu_custom_call.1} parent=47 // pred_check
          %p342 = pneg %p81
        $region54: #{tpu_custom_call.1} parent=47 // pred_check_branch
          %344 = sbr.rel (%p342) target = $region56
        $region55: #{tpu_custom_call.1} parent=47 // pred_region
          %345 = dma.done [#allocation6], 2048
        $region56: #{tpu_custom_call.1} parent=47 // pred_fallthru
          _
        // Predicated region
        $region57: #{tpu_custom_call.1} parent=47 // pred_check
          %p346 = pneg %p102
        $region58: #{tpu_custom_call.1} parent=47 // pred_check_branch
          %348 = sbr.rel (%p346) target = $region60
        $region59: #{tpu_custom_call.1} parent=47 // pred_region
          %349 = dma.done [#allocation6], 16
        $region60: #{tpu_custom_call.1} parent=47 // pred_fallthru
          _
        // Predicated region
        $region61: #{tpu_custom_call.1} parent=47 // pred_check
          %p350 = pneg %p123
        $region62: #{tpu_custom_call.1} parent=47 // pred_check_branch
          %352 = sbr.rel (%p350) target = $region64
        $region63: #{tpu_custom_call.1} parent=47 // pred_region
          %353 = dma.done [#allocation9], 192
        $region64: #{tpu_custom_call.1} parent=47 // pred_fallthru
          _
        // Predicated region
        $region65: #{tpu_custom_call.1} parent=47 // pred_check
          %p354 = pneg %p144
        $region66: #{tpu_custom_call.1} parent=47 // pred_check_branch
          %356 = sbr.rel (%p354) target = $region68
        $region67: #{tpu_custom_call.1} parent=47 // pred_region
          %357 = dma.done [#allocation9], 16
        $region68: #{tpu_custom_call.1} parent=47 // pred_fallthru
          _
        // Predicated region
        $region69: #{tpu_custom_call.1} parent=47 // pred_check
          %p358 = pneg %p165
        $region70: #{tpu_custom_call.1} parent=47 // pred_check_branch
          %360 = sbr.rel (%p358) target = $region72
        $region71: #{tpu_custom_call.1} parent=47 // pred_region
          %361 = dma.done [#allocation12], 2048
        $region72: #{tpu_custom_call.1} parent=47 // pred_fallthru
          _
        // Predicated region
        $region73: #{tpu_custom_call.1} parent=47 // pred_check
          %p362 = pneg %p186
        $region74: #{tpu_custom_call.1} parent=47 // pred_check_branch
          %364 = sbr.rel (%p362) target = $region76
        $region75: #{tpu_custom_call.1} parent=47 // pred_region
          %365 = dma.done [#allocation12], 16
        $region76: #{tpu_custom_call.1} parent=47 // pred_fallthru
          _
        %s366 = sand.u32 %s47, 1
        %s367 = scalar_lea.sflag [#allocation3], %s366
        %s368 = sand.u32 %s47, 1
        %s369 = smul.addr %s368, 432
        %s370 = scalar_lea.vmem [#allocation2], %s369
        %p371 = pneg %p60
        %p372 = pneg %p57
        %p373 = pneg %p81
        %p374 = pneg %p78
        %p375 = pneg %p102
        %p376 = pneg %p99
        %p377 = pneg %p123
        %p378 = pneg %p120
        %p379 = pneg %p144
        %p380 = pneg %p141
        %p381 = pneg %p165
        %p382 = pneg %p162
        %p383 = pneg %p186
        %p384 = pneg %p183
        %p385 = pneg %p214
        %p386 = pneg %p211
        %s387 = sand.u32 %s201, 1
        %s388 = scalar_lea.sflag [#allocation4], %s387
        %s389 = sand.u32 %s201, 1
        %s390 = smul.addr %s389, 64
        %s391 = scalar_lea.vmem [#allocation14], %s390
        %s392 = smul.u32 4, %s32
        %s393 = smul.u32 %s32, 4
        %s394 = smul.u32 %s393, 24
        %s395 = scalar_lea.vmem %s337, %s394 [#allocation2]
        %v396 = vld [vmem:[%s395] sm:$0xff]
        %v397 = vld [vmem:[%s395 + $0x8] sm:$0xff]
        %v398 = vld [vmem:[%s395 + $0x10] sm:$0x3]
        %v399 = vld [vmem:[%s395 + $0x18] sm:$0xff]
        %v400 = vld [vmem:[%s395 + $0x20] sm:$0xff]
        %v401 = vld [vmem:[%s395 + $0x28] sm:$0x3]
        %v402 = vld [vmem:[%s395 + $0x30] sm:$0xff]
        %v403 = vld [vmem:[%s395 + $0x38] sm:$0xff]
        %v404 = vld [vmem:[%s395 + $0x40] sm:$0x3]
        %v405 = vld [vmem:[%s395 + $0x48] sm:$0xff]
        %v406 = vld [vmem:[%s395 + $0x50] sm:$0xff]
        %v407 = vld [vmem:[%s395 + $0x58] sm:$0x3]
        %v408 = vld [vmem:[%s395 + $0x60] sm:$0xff]
        %v409 = vld [vmem:[%s395 + $0x68] sm:$0xff]
        %v410 = vld [vmem:[%s395 + $0x70] sm:$0x3]
        %v411 = vld [vmem:[%s395 + $0x78] sm:$0xff]
        %v412 = vld [vmem:[%s395 + $0x80] sm:$0xff]
        %v413 = vld [vmem:[%s395 + $0x88] sm:$0x3]
        %v432 = vcombine.high %v396, %v396
        %v434 = vunpack.c.l.s4 1983009808
        %v435 = vunpack.c.0.s8 %v434
        %v436 = vlaneseq
        %v437 = vshrl.u32 %v436, 7
        %v438 = vsub.s32 %v435, %v437
        %v439 = vrot.slane %v396, %v438
        %v441 = vunpack.c.l.s4 1983009808
        %v442 = vunpack.c.0.s8 %v441
        %v443 = vlaneseq
        %v444 = vshrl.u32 %v443, 7
        %v445 = vsub.s32 %v442, %v444
        %v446 = vrot.slane %v432, %v445
        %v447 = vcombine.high %v439, %v439
        %v448 = vcombine.high %v446, %v446
        %v449 = vcombine.high %v397, %v397
        %v451 = vunpack.c.l.s4 1983009808
        %v452 = vunpack.c.0.s8 %v451
        %v453 = vlaneseq
        %v454 = vshrl.u32 %v453, 7
        %v455 = vsub.s32 %v452, %v454
        %v456 = vrot.slane %v397, %v455
        %v458 = vunpack.c.l.s4 1983009808
        %v459 = vunpack.c.0.s8 %v458
        %v460 = vlaneseq
        %v461 = vshrl.u32 %v460, 7
        %v462 = vsub.s32 %v459, %v461
        %v463 = vrot.slane %v449, %v462
        %v464 = vcombine.high %v456, %v456
        %v465 = vcombine.high %v463, %v463
        %v467 = vunpack.c.l.s4 1983009808
        %v468 = vunpack.c.0.s8 %v467
        %v469 = vlaneseq
        %v470 = vshrl.u32 %v469, 7
        %v471 = vsub.s32 %v468, %v470
        %v472 = vrot.slane %v398, %v471
        %v473 = vcombine.high %v399, %v399
        %v475 = vunpack.c.l.s4 1983009808
        %v476 = vunpack.c.0.s8 %v475
        %v477 = vlaneseq
        %v478 = vshrl.u32 %v477, 7
        %v479 = vsub.s32 %v476, %v478
        %v480 = vrot.slane %v399, %v479
        %v482 = vunpack.c.l.s4 1983009808
        %v483 = vunpack.c.0.s8 %v482
        %v484 = vlaneseq
        %v485 = vshrl.u32 %v484, 7
        %v486 = vsub.s32 %v483, %v485
        %v487 = vrot.slane %v473, %v486
        %v488 = vcombine.high %v480, %v480
        %v489 = vcombine.high %v487, %v487
        %v490 = vcombine.high %v400, %v400
        %v492 = vunpack.c.l.s4 1983009808
        %v493 = vunpack.c.0.s8 %v492
        %v494 = vlaneseq
        %v495 = vshrl.u32 %v494, 7
        %v496 = vsub.s32 %v493, %v495
        %v497 = vrot.slane %v400, %v496
        %v499 = vunpack.c.l.s4 1983009808
        %v500 = vunpack.c.0.s8 %v499
        %v501 = vlaneseq
        %v502 = vshrl.u32 %v501, 7
        %v503 = vsub.s32 %v500, %v502
        %v504 = vrot.slane %v490, %v503
        %v505 = vcombine.high %v497, %v497
        %v506 = vcombine.high %v504, %v504
        %v508 = vunpack.c.l.s4 1983009808
        %v509 = vunpack.c.0.s8 %v508
        %v510 = vlaneseq
        %v511 = vshrl.u32 %v510, 7
        %v512 = vsub.s32 %v509, %v511
        %v513 = vrot.slane %v401, %v512
        %v514 = vcombine.high %v402, %v402
        %v516 = vunpack.c.l.s4 1983009808
        %v517 = vunpack.c.0.s8 %v516
        %v518 = vlaneseq
        %v519 = vshrl.u32 %v518, 7
        %v520 = vsub.s32 %v517, %v519
        %v521 = vrot.slane %v402, %v520
        %v523 = vunpack.c.l.s4 1983009808
        %v524 = vunpack.c.0.s8 %v523
        %v525 = vlaneseq
        %v526 = vshrl.u32 %v525, 7
        %v527 = vsub.s32 %v524, %v526
        %v528 = vrot.slane %v514, %v527
        %v529 = vcombine.high %v521, %v521
        %v530 = vcombine.high %v528, %v528
        %v531 = vcombine.high %v403, %v403
        %v533 = vunpack.c.l.s4 1983009808
        %v534 = vunpack.c.0.s8 %v533
        %v535 = vlaneseq
        %v536 = vshrl.u32 %v535, 7
        %v537 = vsub.s32 %v534, %v536
        %v538 = vrot.slane %v403, %v537
        %v540 = vunpack.c.l.s4 1983009808
        %v541 = vunpack.c.0.s8 %v540
        %v542 = vlaneseq
        %v543 = vshrl.u32 %v542, 7
        %v544 = vsub.s32 %v541, %v543
        %v545 = vrot.slane %v531, %v544
        %v546 = vcombine.high %v538, %v538
        %v547 = vcombine.high %v545, %v545
        %v549 = vunpack.c.l.s4 1983009808
        %v550 = vunpack.c.0.s8 %v549
        %v551 = vlaneseq
        %v552 = vshrl.u32 %v551, 7
        %v553 = vsub.s32 %v550, %v552
        %v554 = vrot.slane %v404, %v553
        %v555 = vcombine.high %v405, %v405
        %v557 = vunpack.c.l.s4 1983009808
        %v558 = vunpack.c.0.s8 %v557
        %v559 = vlaneseq
        %v560 = vshrl.u32 %v559, 7
        %v561 = vsub.s32 %v558, %v560
        %v562 = vrot.slane %v405, %v561
        %v564 = vunpack.c.l.s4 1983009808
        %v565 = vunpack.c.0.s8 %v564
        %v566 = vlaneseq
        %v567 = vshrl.u32 %v566, 7
        %v568 = vsub.s32 %v565, %v567
        %v569 = vrot.slane %v555, %v568
        %v570 = vcombine.high %v562, %v562
        %v571 = vcombine.high %v569, %v569
        %v572 = vcombine.high %v406, %v406
        %v574 = vunpack.c.l.s4 1983009808
        %v575 = vunpack.c.0.s8 %v574
        %v576 = vlaneseq
        %v577 = vshrl.u32 %v576, 7
        %v578 = vsub.s32 %v575, %v577
        %v579 = vrot.slane %v406, %v578
        %v581 = vunpack.c.l.s4 1983009808
        %v582 = vunpack.c.0.s8 %v581
        %v583 = vlaneseq
        %v584 = vshrl.u32 %v583, 7
        %v585 = vsub.s32 %v582, %v584
        %v586 = vrot.slane %v572, %v585
        %v587 = vcombine.high %v579, %v579
        %v588 = vcombine.high %v586, %v586
        %v590 = vunpack.c.l.s4 1983009808
        %v591 = vunpack.c.0.s8 %v590
        %v592 = vlaneseq
        %v593 = vshrl.u32 %v592, 7
        %v594 = vsub.s32 %v591, %v593
        %v595 = vrot.slane %v407, %v594
        %v596 = vcombine.high %v408, %v408
        %v598 = vunpack.c.l.s4 1983009808
        %v599 = vunpack.c.0.s8 %v598
        %v600 = vlaneseq
        %v601 = vshrl.u32 %v600, 7
        %v602 = vsub.s32 %v599, %v601
        %v603 = vrot.slane %v408, %v602
        %v605 = vunpack.c.l.s4 1983009808
        %v606 = vunpack.c.0.s8 %v605
        %v607 = vlaneseq
        %v608 = vshrl.u32 %v607, 7
        %v609 = vsub.s32 %v606, %v608
        %v610 = vrot.slane %v596, %v609
        %v611 = vcombine.high %v603, %v603
        %v612 = vcombine.high %v610, %v610
        %v613 = vcombine.high %v409, %v409
        %v615 = vunpack.c.l.s4 1983009808
        %v616 = vunpack.c.0.s8 %v615
        %v617 = vlaneseq
        %v618 = vshrl.u32 %v617, 7
        %v619 = vsub.s32 %v616, %v618
        %v620 = vrot.slane %v409, %v619
        %v622 = vunpack.c.l.s4 1983009808
        %v623 = vunpack.c.0.s8 %v622
        %v624 = vlaneseq
        %v625 = vshrl.u32 %v624, 7
        %v626 = vsub.s32 %v623, %v625
        %v627 = vrot.slane %v613, %v626
        %v628 = vcombine.high %v620, %v620
        %v629 = vcombine.high %v627, %v627
        %v631 = vunpack.c.l.s4 1983009808
        %v632 = vunpack.c.0.s8 %v631
        %v633 = vlaneseq
        %v634 = vshrl.u32 %v633, 7
        %v635 = vsub.s32 %v632, %v634
        %v636 = vrot.slane %v410, %v635
        %v637 = vcombine.high %v411, %v411
        %v639 = vunpack.c.l.s4 1983009808
        %v640 = vunpack.c.0.s8 %v639
        %v641 = vlaneseq
        %v642 = vshrl.u32 %v641, 7
        %v643 = vsub.s32 %v640, %v642
        %v644 = vrot.slane %v411, %v643
        %v646 = vunpack.c.l.s4 1983009808
        %v647 = vunpack.c.0.s8 %v646
        %v648 = vlaneseq
        %v649 = vshrl.u32 %v648, 7
        %v650 = vsub.s32 %v647, %v649
        %v651 = vrot.slane %v637, %v650
        %v652 = vcombine.high %v644, %v644
        %v653 = vcombine.high %v651, %v651
        %v654 = vcombine.high %v412, %v412
        %v656 = vunpack.c.l.s4 1983009808
        %v657 = vunpack.c.0.s8 %v656
        %v658 = vlaneseq
        %v659 = vshrl.u32 %v658, 7
        %v660 = vsub.s32 %v657, %v659
        %v661 = vrot.slane %v412, %v660
        %v663 = vunpack.c.l.s4 1983009808
        %v664 = vunpack.c.0.s8 %v663
        %v665 = vlaneseq
        %v666 = vshrl.u32 %v665, 7
        %v667 = vsub.s32 %v664, %v666
        %v668 = vrot.slane %v654, %v667
        %v669 = vcombine.high %v661, %v661
        %v670 = vcombine.high %v668, %v668
        %v672 = vunpack.c.l.s4 1983009808
        %v673 = vunpack.c.0.s8 %v672
        %v674 = vlaneseq
        %v675 = vshrl.u32 %v674, 7
        %v676 = vsub.s32 %v673, %v675
        %v677 = vrot.slane %v413, %v676
        %v678 = vld [vmem:[#allocation5] sm:$0xff]
        %v679 = vld [vmem:[#allocation5 + $0x8] sm:$0xff]
        %v680 = vld [vmem:[#allocation5 + $0x10] sm:$0xff]
        %v681 = vld [vmem:[#allocation5 + $0x18] sm:$0xff]
        %v682 = vld [vmem:[#allocation5 + $0x20] sm:$0xff]
        %v683 = vld [vmem:[#allocation5 + $0x28] sm:$0xff]
        %v684 = vld [vmem:[#allocation5 + $0x30] sm:$0xff]
        %v685 = vld [vmem:[#allocation5 + $0x38] sm:$0xff]
        %v686 = vld [vmem:[#allocation5 + $0x40] sm:$0xff]
        %v687 = vld [vmem:[#allocation5 + $0x48] sm:$0xff]
        %v688 = vld [vmem:[#allocation5 + $0x50] sm:$0xff]
        %v689 = vld [vmem:[#allocation5 + $0x58] sm:$0xff]
        %v690 = vld [vmem:[#allocation5 + $0x60] sm:$0xff]
        %v691 = vld [vmem:[#allocation5 + $0x68] sm:$0xff]
        %v692 = vld [vmem:[#allocation5 + $0x70] sm:$0xff]
        %v693 = vld [vmem:[#allocation5 + $0x78] sm:$0xff]
        %v694 = vcombine.low %v439, %v447
        %v695 = vcombine.low %v446, %v448
        %v697 = vunpack.c.l.s4 1983009808
        %v698 = vunpack.c.0.s8 %v697
        %v699 = vlaneseq
        %v700 = vshrl.u32 %v699, 7
        %v701 = vsub.s32 %v698, %v700
        %v702 = vrot.slane %v694, %v701
        %v704 = vunpack.c.l.s4 1983009808
        %v705 = vunpack.c.0.s8 %v704
        %v706 = vlaneseq
        %v707 = vshrl.u32 %v706, 7
        %v708 = vsub.s32 %v705, %v707
        %v709 = vrot.slane %v695, %v708
        %v710 = vcombine.low %v702, %v709
        %v711 = vcombine.low %v456, %v464
        %v712 = vcombine.low %v463, %v465
        %v714 = vunpack.c.l.s4 1983009808
        %v715 = vunpack.c.0.s8 %v714
        %v716 = vlaneseq
        %v717 = vshrl.u32 %v716, 7
        %v718 = vsub.s32 %v715, %v717
        %v719 = vrot.slane %v711, %v718
        %v721 = vunpack.c.l.s4 1983009808
        %v722 = vunpack.c.0.s8 %v721
        %v723 = vlaneseq
        %v724 = vshrl.u32 %v723, 7
        %v725 = vsub.s32 %v722, %v724
        %v726 = vrot.slane %v712, %v725
        %v727 = vcombine.low %v719, %v726
        %v728 = vcombine.low %v472, %v480
        %v729 = vcombine.low %v488, %v487
        %v731 = vunpack.c.l.s4 1983009808
        %v732 = vunpack.c.0.s8 %v731
        %v733 = vlaneseq
        %v734 = vshrl.u32 %v733, 7
        %v735 = vsub.s32 %v732, %v734
        %v736 = vrot.slane %v728, %v735
        %v738 = vunpack.c.l.s4 1983009808
        %v739 = vunpack.c.0.s8 %v738
        %v740 = vlaneseq
        %v741 = vshrl.u32 %v740, 7
        %v742 = vsub.s32 %v739, %v741
        %v743 = vrot.slane %v729, %v742
        %v744 = vcombine.low %v736, %v743
        %v745 = vcombine.low %v489, %v497
        %v746 = vcombine.low %v505, %v504
        %v748 = vunpack.c.l.s4 1983009808
        %v749 = vunpack.c.0.s8 %v748
        %v750 = vlaneseq
        %v751 = vshrl.u32 %v750, 7
        %v752 = vsub.s32 %v749, %v751
        %v753 = vrot.slane %v745, %v752
        %v755 = vunpack.c.l.s4 1983009808
        %v756 = vunpack.c.0.s8 %v755
        %v757 = vlaneseq
        %v758 = vshrl.u32 %v757, 7
        %v759 = vsub.s32 %v756, %v758
        %v760 = vrot.slane %v746, %v759
        %v761 = vcombine.low %v753, %v760
        %v762 = vcombine.low %v506, %v513
        %v763 = vcombine.low %v521, %v529
        %v765 = vunpack.c.l.s4 1983009808
        %v766 = vunpack.c.0.s8 %v765
        %v767 = vlaneseq
        %v768 = vshrl.u32 %v767, 7
        %v769 = vsub.s32 %v766, %v768
        %v770 = vrot.slane %v762, %v769
        %v772 = vunpack.c.l.s4 1983009808
        %v773 = vunpack.c.0.s8 %v772
        %v774 = vlaneseq
        %v775 = vshrl.u32 %v774, 7
        %v776 = vsub.s32 %v773, %v775
        %v777 = vrot.slane %v763, %v776
        %v778 = vcombine.low %v770, %v777
        %v779 = vcombine.low %v528, %v530
        %v780 = vcombine.low %v538, %v546
        %v782 = vunpack.c.l.s4 1983009808
        %v783 = vunpack.c.0.s8 %v782
        %v784 = vlaneseq
        %v785 = vshrl.u32 %v784, 7
        %v786 = vsub.s32 %v783, %v785
        %v787 = vrot.slane %v779, %v786
        %v789 = vunpack.c.l.s4 1983009808
        %v790 = vunpack.c.0.s8 %v789
        %v791 = vlaneseq
        %v792 = vshrl.u32 %v791, 7
        %v793 = vsub.s32 %v790, %v792
        %v794 = vrot.slane %v780, %v793
        %v795 = vcombine.low %v787, %v794
        %v796 = vcombine.low %v545, %v547
        %v797 = vcombine.low %v554, %v562
        %v799 = vunpack.c.l.s4 1983009808
        %v800 = vunpack.c.0.s8 %v799
        %v801 = vlaneseq
        %v802 = vshrl.u32 %v801, 7
        %v803 = vsub.s32 %v800, %v802
        %v804 = vrot.slane %v796, %v803
        %v806 = vunpack.c.l.s4 1983009808
        %v807 = vunpack.c.0.s8 %v806
        %v808 = vlaneseq
        %v809 = vshrl.u32 %v808, 7
        %v810 = vsub.s32 %v807, %v809
        %v811 = vrot.slane %v797, %v810
        %v812 = vcombine.low %v804, %v811
        %v813 = vcombine.low %v570, %v569
        %v814 = vcombine.low %v571, %v579
        %v816 = vunpack.c.l.s4 1983009808
        %v817 = vunpack.c.0.s8 %v816
        %v818 = vlaneseq
        %v819 = vshrl.u32 %v818, 7
        %v820 = vsub.s32 %v817, %v819
        %v821 = vrot.slane %v813, %v820
        %v823 = vunpack.c.l.s4 1983009808
        %v824 = vunpack.c.0.s8 %v823
        %v825 = vlaneseq
        %v826 = vshrl.u32 %v825, 7
        %v827 = vsub.s32 %v824, %v826
        %v828 = vrot.slane %v814, %v827
        %v829 = vcombine.low %v821, %v828
        %v830 = vcombine.low %v587, %v586
        %v831 = vcombine.low %v588, %v595
        %v833 = vunpack.c.l.s4 1983009808
        %v834 = vunpack.c.0.s8 %v833
        %v835 = vlaneseq
        %v836 = vshrl.u32 %v835, 7
        %v837 = vsub.s32 %v834, %v836
        %v838 = vrot.slane %v830, %v837
        %v840 = vunpack.c.l.s4 1983009808
        %v841 = vunpack.c.0.s8 %v840
        %v842 = vlaneseq
        %v843 = vshrl.u32 %v842, 7
        %v844 = vsub.s32 %v841, %v843
        %v845 = vrot.slane %v831, %v844
        %v846 = vcombine.low %v838, %v845
        %v847 = vcombine.low %v603, %v611
        %v848 = vcombine.low %v610, %v612
        %v850 = vunpack.c.l.s4 1983009808
        %v851 = vunpack.c.0.s8 %v850
        %v852 = vlaneseq
        %v853 = vshrl.u32 %v852, 7
        %v854 = vsub.s32 %v851, %v853
        %v855 = vrot.slane %v847, %v854
        %v857 = vunpack.c.l.s4 1983009808
        %v858 = vunpack.c.0.s8 %v857
        %v859 = vlaneseq
        %v860 = vshrl.u32 %v859, 7
        %v861 = vsub.s32 %v858, %v860
        %v862 = vrot.slane %v848, %v861
        %v863 = vcombine.low %v855, %v862
        %v864 = vcombine.low %v620, %v628
        %v865 = vcombine.low %v627, %v629
        %v867 = vunpack.c.l.s4 1983009808
        %v868 = vunpack.c.0.s8 %v867
        %v869 = vlaneseq
        %v870 = vshrl.u32 %v869, 7
        %v871 = vsub.s32 %v868, %v870
        %v872 = vrot.slane %v864, %v871
        %v874 = vunpack.c.l.s4 1983009808
        %v875 = vunpack.c.0.s8 %v874
        %v876 = vlaneseq
        %v877 = vshrl.u32 %v876, 7
        %v878 = vsub.s32 %v875, %v877
        %v879 = vrot.slane %v865, %v878
        %v880 = vcombine.low %v872, %v879
        %v881 = vcombine.low %v636, %v644
        %v882 = vcombine.low %v652, %v651
        %v884 = vunpack.c.l.s4 1983009808
        %v885 = vunpack.c.0.s8 %v884
        %v886 = vlaneseq
        %v887 = vshrl.u32 %v886, 7
        %v888 = vsub.s32 %v885, %v887
        %v889 = vrot.slane %v881, %v888
        %v891 = vunpack.c.l.s4 1983009808
        %v892 = vunpack.c.0.s8 %v891
        %v893 = vlaneseq
        %v894 = vshrl.u32 %v893, 7
        %v895 = vsub.s32 %v892, %v894
        %v896 = vrot.slane %v882, %v895
        %v897 = vcombine.low %v889, %v896
        %v898 = vcombine.low %v653, %v661
        %v899 = vcombine.low %v669, %v668
        %v901 = vunpack.c.l.s4 1983009808
        %v902 = vunpack.c.0.s8 %v901
        %v903 = vlaneseq
        %v904 = vshrl.u32 %v903, 7
        %v905 = vsub.s32 %v902, %v904
        %v906 = vrot.slane %v898, %v905
        %v908 = vunpack.c.l.s4 1983009808
        %v909 = vunpack.c.0.s8 %v908
        %v910 = vlaneseq
        %v911 = vshrl.u32 %v910, 7
        %v912 = vsub.s32 %v909, %v911
        %v913 = vrot.slane %v899, %v912
        %v914 = vcombine.low %v906, %v913
        %v915 = vcombine.low %v670, %v677
        %v917 = vunpack.c.l.s4 1983009808
        %v918 = vunpack.c.0.s8 %v917
        %v919 = vlaneseq
        %v920 = vshrl.u32 %v919, 7
        %v921 = vsub.s32 %v918, %v920
        %v922 = vrot.slane %v915, %v921
        %937 = vmatprep.subr.mxu0 0.0
        %938 = vmatpush1.msra.mxu0 %v678
        %939 = vmatprep.subr.mxu0 0.0
        %940 = vmatpush1.msra.mxu0 %v679
        %941 = vmatprep.subr.mxu0 0.0
        %942 = vmatpush1.msra.mxu0 %v680
        %943 = vmatprep.subr.mxu0 0.0
        %944 = vmatpush1.msra.mxu0 %v681
        %945 = vmatprep.subr.mxu0 0.0
        %946 = vmatpush1.msra.mxu0 %v682
        %947 = vmatprep.subr.mxu0 0.0
        %948 = vmatpush1.msra.mxu0 %v683
        %949 = vmatprep.subr.mxu0 0.0
        %950 = vmatpush1.msra.mxu0 %v684
        %951 = vmatprep.subr.mxu0 0.0
        %952 = vmatpush1.msra.mxu0 %v685
        %953 = vmatprep.subr.mxu0 0.0
        %954 = vmatpush1.msra.mxu0 %v686
        %955 = vmatprep.subr.mxu0 0.0
        %956 = vmatpush1.msra.mxu0 %v687
        %957 = vmatprep.subr.mxu0 0.0
        %958 = vmatpush1.msra.mxu0 %v688
        %959 = vmatprep.subr.mxu0 0.0
        %960 = vmatpush1.msra.mxu0 %v689
        %961 = vmatprep.subr.mxu0 0.0
        %962 = vmatpush1.msra.mxu0 %v690
        %963 = vmatprep.subr.mxu0 0.0
        %964 = vmatpush1.msra.mxu0 %v691
        %965 = vmatprep.subr.mxu0 0.0
        %966 = vmatpush1.msra.mxu0 %v692
        %967 = vmatprep.subr.mxu0 0.0
        %968 = vmatpush1.msra.mxu0 %v693
        %969 = vmatprep.subr.mxu0 0.0
        %970 = vmatpush1.msra.mxu0 0.0
        %971 = vmatprep.subr.mxu0 0.0
        %972 = vmatpush1.msra.mxu0 0.0
        %973 = vmatprep.subr.mxu0 0.0
        %974 = vmatpush1.msra.mxu0 0.0
        %975 = vmatprep.subr.mxu0 0.0
        %976 = vmatpush1.msra.mxu0 0.0
        %977 = vmatprep.subr.mxu0 0.0
        %978 = vmatpush1.msra.mxu0 0.0
        %979 = vmatprep.subr.mxu0 0.0
        %980 = vmatpush1.msra.mxu0 0.0
        %981 = vmatprep.subr.mxu0 0.0
        %982 = vmatpush1.msra.mxu0 0.0
        %983 = vmatprep.subr.mxu0 0.0
        %984 = vmatpush1.msra.mxu0 0.0
        %985 = vmatprep.subr.mxu0 0.0
        %986 = vmatpush1.msra.mxu0 0.0
        %987 = vmatprep.subr.mxu0 0.0
        %988 = vmatpush1.msra.mxu0 0.0
        %989 = vmatprep.subr.mxu0 0.0
        %990 = vmatpush1.msra.mxu0 0.0
        %991 = vmatprep.subr.mxu0 0.0
        %992 = vmatpush1.msra.mxu0 0.0
        %993 = vmatprep.subr.mxu0 0.0
        %994 = vmatpush1.msra.mxu0 0.0
        %995 = vmatprep.subr.mxu0 0.0
        %996 = vmatpush1.msra.mxu0 0.0
        %997 = vmatprep.subr.mxu0 0.0
        %998 = vmatpush1.msra.mxu0 0.0
        %999 = vmatprep.subr.mxu0 0.0
        %1000 = vmatpush1.msra.mxu0 0.0
        %1001 = vmatprep.mubr.f32.mxu0 0.0
        %1002 = vmatmul.mubr.f32.gmra.mrb[0].mxu0 %v710
        %v1003 = vpop.f32.mrb[0].mxu0
        %v1004 = vadd.f32 0.0, %v1003
        %v1005 = vpop.f32.mrb[0].mxu0
        %1006 = vmatprep.mubr.f32.mxu0 0.0
        %1007 = vmatmul.mubr.f32.gmra.mrb[0].mxu0 %v727
        %v1008 = vpop.f32.mrb[0].mxu0
        %v1009 = vadd.f32 0.0, %v1008
        %v1010 = vpop.f32.mrb[0].mxu0
        %1011 = vmatprep.mubr.f32.mxu0 0.0
        %1012 = vmatmul.mubr.f32.gmra.mrb[0].mxu0 %v744
        %v1013 = vpop.f32.mrb[0].mxu0
        %v1014 = vadd.f32 0.0, %v1013
        %v1015 = vpop.f32.mrb[0].mxu0
        %1016 = vmatprep.mubr.f32.mxu0 0.0
        %1017 = vmatmul.mubr.f32.gmra.mrb[0].mxu0 %v761
        %v1018 = vpop.f32.mrb[0].mxu0
        %v1019 = vadd.f32 0.0, %v1018
        %v1020 = vpop.f32.mrb[0].mxu0
        %1021 = vmatprep.mubr.f32.mxu0 0.0
        %1022 = vmatmul.mubr.f32.gmra.mrb[0].mxu0 %v778
        %v1023 = vpop.f32.mrb[0].mxu0
        %v1024 = vadd.f32 0.0, %v1023
        %v1025 = vpop.f32.mrb[0].mxu0
        %1026 = vmatprep.mubr.f32.mxu0 0.0
        %1027 = vmatmul.mubr.f32.gmra.mrb[0].mxu0 %v795
        %v1028 = vpop.f32.mrb[0].mxu0
        %v1029 = vadd.f32 0.0, %v1028
        %v1030 = vpop.f32.mrb[0].mxu0
        %1031 = vmatprep.mubr.f32.mxu0 0.0
        %1032 = vmatmul.mubr.f32.gmra.mrb[0].mxu0 %v812
        %v1033 = vpop.f32.mrb[0].mxu0
        %v1034 = vadd.f32 0.0, %v1033
        %v1035 = vpop.f32.mrb[0].mxu0
        %1036 = vmatprep.mubr.f32.mxu0 0.0
        %1037 = vmatmul.mubr.f32.gmra.mrb[0].mxu0 %v829
        %v1038 = vpop.f32.mrb[0].mxu0
        %v1039 = vadd.f32 0.0, %v1038
        %v1040 = vpop.f32.mrb[0].mxu0
        %1041 = vmatprep.mubr.f32.mxu0 0.0
        %1042 = vmatmul.mubr.f32.gmra.mrb[0].mxu0 %v846
        %v1043 = vpop.f32.mrb[0].mxu0
        %v1044 = vadd.f32 0.0, %v1043
        %v1045 = vpop.f32.mrb[0].mxu0
        %1046 = vmatprep.mubr.f32.mxu0 0.0
        %1047 = vmatmul.mubr.f32.gmra.mrb[0].mxu0 %v863
        %v1048 = vpop.f32.mrb[0].mxu0
        %v1049 = vadd.f32 0.0, %v1048
        %v1050 = vpop.f32.mrb[0].mxu0
        %1051 = vmatprep.mubr.f32.mxu0 0.0
        %1052 = vmatmul.mubr.f32.gmra.mrb[0].mxu0 %v880
        %v1053 = vpop.f32.mrb[0].mxu0
        %v1054 = vadd.f32 0.0, %v1053
        %v1055 = vpop.f32.mrb[0].mxu0
        %1056 = vmatprep.mubr.f32.mxu0 0.0
        %1057 = vmatmul.mubr.f32.gmra.mrb[0].mxu0 %v897
        %v1058 = vpop.f32.mrb[0].mxu0
        %v1059 = vadd.f32 0.0, %v1058
        %v1060 = vpop.f32.mrb[0].mxu0
        %1061 = vmatprep.mubr.f32.mxu0 0.0
        %1062 = vmatmul.mubr.f32.gmra.mrb[0].mxu0 %v914
        %v1063 = vpop.f32.mrb[0].mxu0
        %v1064 = vadd.f32 0.0, %v1063
        %v1065 = vpop.f32.mrb[0].mxu0
        %1066 = vmatprep.mubr.f32.mxu0 0.0
        %1067 = vmatmul.mubr.f32.gmra.mrb[0].mxu0 %v922
        %v1068 = vpop.f32.mrb[0].mxu0
        %v1069 = vadd.f32 0.0, %v1068
        %v1070 = vpop.f32.mrb[0].mxu0
        %1071 = vdwg.mxu0
        %v1086 = vcombine.high %v1004, %v1004
        %v1088 = vunpack.c.l.s4 1983009808
        %v1089 = vunpack.c.0.s8 %v1088
        %v1090 = vlaneseq
        %v1091 = vshrl.u32 %v1090, 7
        %v1092 = vsub.s32 %v1089, %v1091
        %v1093 = vrot.slane %v1004, %v1092
        %v1095 = vunpack.c.l.s4 1983009808
        %v1096 = vunpack.c.0.s8 %v1095
        %v1097 = vlaneseq
        %v1098 = vshrl.u32 %v1097, 7
        %v1099 = vsub.s32 %v1096, %v1098
        %v1100 = vrot.slane %v1086, %v1099
        %v1101 = vcombine.high %v1093, %v1093
        %v1102 = vcombine.high %v1100, %v1100
        %v1103 = vcombine.high %v1009, %v1009
        %v1105 = vunpack.c.l.s4 1983009808
        %v1106 = vunpack.c.0.s8 %v1105
        %v1107 = vlaneseq
        %v1108 = vshrl.u32 %v1107, 7
        %v1109 = vsub.s32 %v1106, %v1108
        %v1110 = vrot.slane %v1009, %v1109
        %v1112 = vunpack.c.l.s4 1983009808
        %v1113 = vunpack.c.0.s8 %v1112
        %v1114 = vlaneseq
        %v1115 = vshrl.u32 %v1114, 7
        %v1116 = vsub.s32 %v1113, %v1115
        %v1117 = vrot.slane %v1103, %v1116
        %v1118 = vcombine.high %v1110, %v1110
        %v1119 = vcombine.high %v1117, %v1117
        %v1120 = vcombine.high %v1014, %v1014
        %v1122 = vunpack.c.l.s4 1983009808
        %v1123 = vunpack.c.0.s8 %v1122
        %v1124 = vlaneseq
        %v1125 = vshrl.u32 %v1124, 7
        %v1126 = vsub.s32 %v1123, %v1125
        %v1127 = vrot.slane %v1014, %v1126
        %v1129 = vunpack.c.l.s4 1983009808
        %v1130 = vunpack.c.0.s8 %v1129
        %v1131 = vlaneseq
        %v1132 = vshrl.u32 %v1131, 7
        %v1133 = vsub.s32 %v1130, %v1132
        %v1134 = vrot.slane %v1120, %v1133
        %v1135 = vcombine.high %v1127, %v1127
        %v1136 = vcombine.high %v1134, %v1134
        %v1137 = vcombine.high %v1019, %v1019
        %v1139 = vunpack.c.l.s4 1983009808
        %v1140 = vunpack.c.0.s8 %v1139
        %v1141 = vlaneseq
        %v1142 = vshrl.u32 %v1141, 7
        %v1143 = vsub.s32 %v1140, %v1142
        %v1144 = vrot.slane %v1019, %v1143
        %v1146 = vunpack.c.l.s4 1983009808
        %v1147 = vunpack.c.0.s8 %v1146
        %v1148 = vlaneseq
        %v1149 = vshrl.u32 %v1148, 7
        %v1150 = vsub.s32 %v1147, %v1149
        %v1151 = vrot.slane %v1137, %v1150
        %v1152 = vcombine.high %v1144, %v1144
        %v1153 = vcombine.high %v1151, %v1151
        %v1154 = vcombine.high %v1024, %v1024
        %v1156 = vunpack.c.l.s4 1983009808
        %v1157 = vunpack.c.0.s8 %v1156
        %v1158 = vlaneseq
        %v1159 = vshrl.u32 %v1158, 7
        %v1160 = vsub.s32 %v1157, %v1159
        %v1161 = vrot.slane %v1024, %v1160
        %v1163 = vunpack.c.l.s4 1983009808
        %v1164 = vunpack.c.0.s8 %v1163
        %v1165 = vlaneseq
        %v1166 = vshrl.u32 %v1165, 7
        %v1167 = vsub.s32 %v1164, %v1166
        %v1168 = vrot.slane %v1154, %v1167
        %v1169 = vcombine.high %v1161, %v1161
        %v1170 = vcombine.high %v1168, %v1168
        %v1171 = vcombine.high %v1029, %v1029
        %v1173 = vunpack.c.l.s4 1983009808
        %v1174 = vunpack.c.0.s8 %v1173
        %v1175 = vlaneseq
        %v1176 = vshrl.u32 %v1175, 7
        %v1177 = vsub.s32 %v1174, %v1176
        %v1178 = vrot.slane %v1029, %v1177
        %v1180 = vunpack.c.l.s4 1983009808
        %v1181 = vunpack.c.0.s8 %v1180
        %v1182 = vlaneseq
        %v1183 = vshrl.u32 %v1182, 7
        %v1184 = vsub.s32 %v1181, %v1183
        %v1185 = vrot.slane %v1171, %v1184
        %v1186 = vcombine.high %v1178, %v1178
        %v1187 = vcombine.high %v1185, %v1185
        %v1188 = vcombine.high %v1034, %v1034
        %v1190 = vunpack.c.l.s4 1983009808
        %v1191 = vunpack.c.0.s8 %v1190
        %v1192 = vlaneseq
        %v1193 = vshrl.u32 %v1192, 7
        %v1194 = vsub.s32 %v1191, %v1193
        %v1195 = vrot.slane %v1034, %v1194
        %v1197 = vunpack.c.l.s4 1983009808
        %v1198 = vunpack.c.0.s8 %v1197
        %v1199 = vlaneseq
        %v1200 = vshrl.u32 %v1199, 7
        %v1201 = vsub.s32 %v1198, %v1200
        %v1202 = vrot.slane %v1188, %v1201
        %v1203 = vcombine.high %v1195, %v1195
        %v1204 = vcombine.high %v1202, %v1202
        %v1205 = vcombine.high %v1039, %v1039
        %v1207 = vunpack.c.l.s4 1983009808
        %v1208 = vunpack.c.0.s8 %v1207
        %v1209 = vlaneseq
        %v1210 = vshrl.u32 %v1209, 7
        %v1211 = vsub.s32 %v1208, %v1210
        %v1212 = vrot.slane %v1039, %v1211
        %v1214 = vunpack.c.l.s4 1983009808
        %v1215 = vunpack.c.0.s8 %v1214
        %v1216 = vlaneseq
        %v1217 = vshrl.u32 %v1216, 7
        %v1218 = vsub.s32 %v1215, %v1217
        %v1219 = vrot.slane %v1205, %v1218
        %v1220 = vcombine.high %v1212, %v1212
        %v1221 = vcombine.high %v1219, %v1219
        %v1222 = vcombine.high %v1044, %v1044
        %v1224 = vunpack.c.l.s4 1983009808
        %v1225 = vunpack.c.0.s8 %v1224
        %v1226 = vlaneseq
        %v1227 = vshrl.u32 %v1226, 7
        %v1228 = vsub.s32 %v1225, %v1227
        %v1229 = vrot.slane %v1044, %v1228
        %v1231 = vunpack.c.l.s4 1983009808
        %v1232 = vunpack.c.0.s8 %v1231
        %v1233 = vlaneseq
        %v1234 = vshrl.u32 %v1233, 7
        %v1235 = vsub.s32 %v1232, %v1234
        %v1236 = vrot.slane %v1222, %v1235
        %v1237 = vcombine.high %v1229, %v1229
        %v1238 = vcombine.high %v1236, %v1236
        %v1239 = vcombine.high %v1049, %v1049
        %v1241 = vunpack.c.l.s4 1983009808
        %v1242 = vunpack.c.0.s8 %v1241
        %v1243 = vlaneseq
        %v1244 = vshrl.u32 %v1243, 7
        %v1245 = vsub.s32 %v1242, %v1244
        %v1246 = vrot.slane %v1049, %v1245
        %v1248 = vunpack.c.l.s4 1983009808
        %v1249 = vunpack.c.0.s8 %v1248
        %v1250 = vlaneseq
        %v1251 = vshrl.u32 %v1250, 7
        %v1252 = vsub.s32 %v1249, %v1251
        %v1253 = vrot.slane %v1239, %v1252
        %v1254 = vcombine.high %v1246, %v1246
        %v1255 = vcombine.high %v1253, %v1253
        %v1256 = vcombine.high %v1054, %v1054
        %v1258 = vunpack.c.l.s4 1983009808
        %v1259 = vunpack.c.0.s8 %v1258
        %v1260 = vlaneseq
        %v1261 = vshrl.u32 %v1260, 7
        %v1262 = vsub.s32 %v1259, %v1261
        %v1263 = vrot.slane %v1054, %v1262
        %v1265 = vunpack.c.l.s4 1983009808
        %v1266 = vunpack.c.0.s8 %v1265
        %v1267 = vlaneseq
        %v1268 = vshrl.u32 %v1267, 7
        %v1269 = vsub.s32 %v1266, %v1268
        %v1270 = vrot.slane %v1256, %v1269
        %v1271 = vcombine.high %v1263, %v1263
        %v1272 = vcombine.high %v1270, %v1270
        %v1273 = vcombine.high %v1059, %v1059
        %v1275 = vunpack.c.l.s4 1983009808
        %v1276 = vunpack.c.0.s8 %v1275
        %v1277 = vlaneseq
        %v1278 = vshrl.u32 %v1277, 7
        %v1279 = vsub.s32 %v1276, %v1278
        %v1280 = vrot.slane %v1059, %v1279
        %v1282 = vunpack.c.l.s4 1983009808
        %v1283 = vunpack.c.0.s8 %v1282
        %v1284 = vlaneseq
        %v1285 = vshrl.u32 %v1284, 7
        %v1286 = vsub.s32 %v1283, %v1285
        %v1287 = vrot.slane %v1273, %v1286
        %v1288 = vcombine.high %v1280, %v1280
        %v1289 = vcombine.high %v1287, %v1287
        %v1290 = vcombine.high %v1064, %v1064
        %v1292 = vunpack.c.l.s4 1983009808
        %v1293 = vunpack.c.0.s8 %v1292
        %v1294 = vlaneseq
        %v1295 = vshrl.u32 %v1294, 7
        %v1296 = vsub.s32 %v1293, %v1295
        %v1297 = vrot.slane %v1064, %v1296
        %v1299 = vunpack.c.l.s4 1983009808
        %v1300 = vunpack.c.0.s8 %v1299
        %v1301 = vlaneseq
        %v1302 = vshrl.u32 %v1301, 7
        %v1303 = vsub.s32 %v1300, %v1302
        %v1304 = vrot.slane %v1290, %v1303
        %v1305 = vcombine.high %v1297, %v1297
        %v1306 = vcombine.high %v1304, %v1304
        %v1308 = vunpack.c.l.s4 1983009808
        %v1309 = vunpack.c.0.s8 %v1308
        %v1310 = vlaneseq
        %v1311 = vshrl.u32 %v1310, 7
        %v1312 = vsub.s32 %v1309, %v1311
        %v1313 = vrot.slane %v1069, %v1312
        %v1314 = vcombine.high %v1313, %v1313
        %v1369 = vld [vmem:[#allocation7] sm:$0x1]
        %v1371 = vlaneseq
        %v1372 = vshrl.u32 %v1371, 7
        %v1373 = vsub.s32 0, %v1372
        %v1374 = vrot.slane %v1369, %v1373
        %v1375 = vcombine.high %v1374, %v1374
        %v1377 = vunpack.c.l.s4 1983009808
        %v1378 = vunpack.c.0.s8 %v1377
        %v1379 = vlaneseq
        %v1380 = vshrl.u32 %v1379, 7
        %v1381 = vsub.s32 %v1378, %v1380
        %v1382 = vrot.slane %v1374, %v1381
        %v1384 = vunpack.c.l.s4 1983009808
        %v1385 = vunpack.c.0.s8 %v1384
        %v1386 = vlaneseq
        %v1387 = vshrl.u32 %v1386, 7
        %v1388 = vsub.s32 %v1385, %v1387
        %v1389 = vrot.slane %v1375, %v1388
        %v1390 = vcombine.high %v1382, %v1382
        %v1391 = vcombine.high %v1389, %v1389
        %v1396 = vadd.f32 %v1093, %v1382
        %v1397 = vadd.f32 %v1101, %v1390
        %v1398 = vadd.f32 %v1100, %v1389
        %v1399 = vadd.f32 %v1102, %v1391
        %v1400 = vadd.f32 %v1110, %v1382
        %v1401 = vadd.f32 %v1118, %v1390
        %v1402 = vadd.f32 %v1117, %v1389
        %v1403 = vadd.f32 %v1119, %v1391
        %v1404 = vadd.f32 %v1127, %v1382
        %v1405 = vadd.f32 %v1135, %v1382
        %v1406 = vadd.f32 %v1134, %v1390
        %v1407 = vadd.f32 %v1136, %v1389
        %v1408 = vadd.f32 %v1144, %v1391
        %v1409 = vadd.f32 %v1152, %v1382
        %v1410 = vadd.f32 %v1151, %v1390
        %v1411 = vadd.f32 %v1153, %v1389
        %v1412 = vadd.f32 %v1161, %v1391
        %v1413 = vadd.f32 %v1169, %v1382
        %v1414 = vadd.f32 %v1168, %v1382
        %v1415 = vadd.f32 %v1170, %v1390
        %v1416 = vadd.f32 %v1178, %v1389
        %v1417 = vadd.f32 %v1186, %v1391
        %v1418 = vadd.f32 %v1185, %v1382
        %v1419 = vadd.f32 %v1187, %v1390
        %v1420 = vadd.f32 %v1195, %v1389
        %v1421 = vadd.f32 %v1203, %v1391
        %v1422 = vadd.f32 %v1202, %v1382
        %v1423 = vadd.f32 %v1204, %v1382
        %v1424 = vadd.f32 %v1212, %v1390
        %v1425 = vadd.f32 %v1220, %v1389
        %v1426 = vadd.f32 %v1219, %v1391
        %v1427 = vadd.f32 %v1221, %v1382
        %v1428 = vadd.f32 %v1229, %v1390
        %v1429 = vadd.f32 %v1237, %v1389
        %v1430 = vadd.f32 %v1236, %v1391
        %v1431 = vadd.f32 %v1238, %v1382
        %v1432 = vadd.f32 %v1246, %v1382
        %v1433 = vadd.f32 %v1254, %v1390
        %v1434 = vadd.f32 %v1253, %v1389
        %v1435 = vadd.f32 %v1255, %v1391
        %v1436 = vadd.f32 %v1263, %v1382
        %v1437 = vadd.f32 %v1271, %v1390
        %v1438 = vadd.f32 %v1270, %v1389
        %v1439 = vadd.f32 %v1272, %v1391
        %v1440 = vadd.f32 %v1280, %v1382
        %v1441 = vadd.f32 %v1288, %v1382
        %v1442 = vadd.f32 %v1287, %v1390
        %v1443 = vadd.f32 %v1289, %v1389
        %v1444 = vadd.f32 %v1297, %v1391
        %v1445 = vadd.f32 %v1305, %v1382
        %v1446 = vadd.f32 %v1304, %v1390
        %v1447 = vadd.f32 %v1306, %v1389
        %v1448 = vadd.f32 %v1313, %v1391
        %v1449 = vadd.f32 %v1314, %v1382
        %v1450 = vmax.f32 %v1396, 0.0
        %v1451 = vmax.f32 %v1397, 0.0
        %v1452 = vmax.f32 %v1398, 0.0
        %v1453 = vmax.f32 %v1399, 0.0
        %v1454 = vmax.f32 %v1400, 0.0
        %v1455 = vmax.f32 %v1401, 0.0
        %v1456 = vmax.f32 %v1402, 0.0
        %v1457 = vmax.f32 %v1403, 0.0
        %v1458 = vmax.f32 %v1404, 0.0
        %v1459 = vmax.f32 %v1405, 0.0
        %v1460 = vmax.f32 %v1406, 0.0
        %v1461 = vmax.f32 %v1407, 0.0
        %v1462 = vmax.f32 %v1408, 0.0
        %v1463 = vmax.f32 %v1409, 0.0
        %v1464 = vmax.f32 %v1410, 0.0
        %v1465 = vmax.f32 %v1411, 0.0
        %v1466 = vmax.f32 %v1412, 0.0
        %v1467 = vmax.f32 %v1413, 0.0
        %v1468 = vmax.f32 %v1414, 0.0
        %v1469 = vmax.f32 %v1415, 0.0
        %v1470 = vmax.f32 %v1416, 0.0
        %v1471 = vmax.f32 %v1417, 0.0
        %v1472 = vmax.f32 %v1418, 0.0
        %v1473 = vmax.f32 %v1419, 0.0
        %v1474 = vmax.f32 %v1420, 0.0
        %v1475 = vmax.f32 %v1421, 0.0
        %v1476 = vmax.f32 %v1422, 0.0
        %v1477 = vmax.f32 %v1423, 0.0
        %v1478 = vmax.f32 %v1424, 0.0
        %v1479 = vmax.f32 %v1425, 0.0
        %v1480 = vmax.f32 %v1426, 0.0
        %v1481 = vmax.f32 %v1427, 0.0
        %v1482 = vmax.f32 %v1428, 0.0
        %v1483 = vmax.f32 %v1429, 0.0
        %v1484 = vmax.f32 %v1430, 0.0
        %v1485 = vmax.f32 %v1431, 0.0
        %v1486 = vmax.f32 %v1432, 0.0
        %v1487 = vmax.f32 %v1433, 0.0
        %v1488 = vmax.f32 %v1434, 0.0
        %v1489 = vmax.f32 %v1435, 0.0
        %v1490 = vmax.f32 %v1436, 0.0
        %v1491 = vmax.f32 %v1437, 0.0
        %v1492 = vmax.f32 %v1438, 0.0
        %v1493 = vmax.f32 %v1439, 0.0
        %v1494 = vmax.f32 %v1440, 0.0
        %v1495 = vmax.f32 %v1441, 0.0
        %v1496 = vmax.f32 %v1442, 0.0
        %v1497 = vmax.f32 %v1443, 0.0
        %v1498 = vmax.f32 %v1444, 0.0
        %v1499 = vmax.f32 %v1445, 0.0
        %v1500 = vmax.f32 %v1446, 0.0
        %v1501 = vmax.f32 %v1447, 0.0
        %v1502 = vmax.f32 %v1448, 0.0
        %v1503 = vmax.f32 %v1449, 0.0
        %v1504 = vmin.f32 %v1450, 6.0
        %v1505 = vmin.f32 %v1451, 6.0
        %v1506 = vmin.f32 %v1452, 6.0
        %v1507 = vmin.f32 %v1453, 6.0
        %v1508 = vmin.f32 %v1454, 6.0
        %v1509 = vmin.f32 %v1455, 6.0
        %v1510 = vmin.f32 %v1456, 6.0
        %v1511 = vmin.f32 %v1457, 6.0
        %v1512 = vmin.f32 %v1458, 6.0
        %v1513 = vmin.f32 %v1459, 6.0
        %v1514 = vmin.f32 %v1460, 6.0
        %v1515 = vmin.f32 %v1461, 6.0
        %v1516 = vmin.f32 %v1462, 6.0
        %v1517 = vmin.f32 %v1463, 6.0
        %v1518 = vmin.f32 %v1464, 6.0
        %v1519 = vmin.f32 %v1465, 6.0
        %v1520 = vmin.f32 %v1466, 6.0
        %v1521 = vmin.f32 %v1467, 6.0
        %v1522 = vmin.f32 %v1468, 6.0
        %v1523 = vmin.f32 %v1469, 6.0
        %v1524 = vmin.f32 %v1470, 6.0
        %v1525 = vmin.f32 %v1471, 6.0
        %v1526 = vmin.f32 %v1472, 6.0
        %v1527 = vmin.f32 %v1473, 6.0
        %v1528 = vmin.f32 %v1474, 6.0
        %v1529 = vmin.f32 %v1475, 6.0
        %v1530 = vmin.f32 %v1476, 6.0
        %v1531 = vmin.f32 %v1477, 6.0
        %v1532 = vmin.f32 %v1478, 6.0
        %v1533 = vmin.f32 %v1479, 6.0
        %v1534 = vmin.f32 %v1480, 6.0
        %v1535 = vmin.f32 %v1481, 6.0
        %v1536 = vmin.f32 %v1482, 6.0
        %v1537 = vmin.f32 %v1483, 6.0
        %v1538 = vmin.f32 %v1484, 6.0
        %v1539 = vmin.f32 %v1485, 6.0
        %v1540 = vmin.f32 %v1486, 6.0
        %v1541 = vmin.f32 %v1487, 6.0
        %v1542 = vmin.f32 %v1488, 6.0
        %v1543 = vmin.f32 %v1489, 6.0
        %v1544 = vmin.f32 %v1490, 6.0
        %v1545 = vmin.f32 %v1491, 6.0
        %v1546 = vmin.f32 %v1492, 6.0
        %v1547 = vmin.f32 %v1493, 6.0
        %v1548 = vmin.f32 %v1494, 6.0
        %v1549 = vmin.f32 %v1495, 6.0
        %v1550 = vmin.f32 %v1496, 6.0
        %v1551 = vmin.f32 %v1497, 6.0
        %v1552 = vmin.f32 %v1498, 6.0
        %v1553 = vmin.f32 %v1499, 6.0
        %v1554 = vmin.f32 %v1500, 6.0
        %v1555 = vmin.f32 %v1501, 6.0
        %v1556 = vmin.f32 %v1502, 6.0
        %v1557 = vmin.f32 %v1503, 6.0
        %v1558 = vstv %s393
        %v1559 = vadd.s32 %v1558, 1
        %v1560 = vadd.s32 %v1558, 2
        %v1561 = vadd.s32 %v1558, 3
        %v1562 = vadd.s32 %v1558, 4
        %v1563 = vadd.s32 %v1558, 5
        %v1564 = vlaneseq
        %v1565 = vshrl.u32 %v1564, 7
        %v1566 = vadd.s32 %v1565, 8
        %v1567 = vadd.s32 %v1565, 16
        %vm1568 = vcmp.ge.s32.totalorder %v1558, 1
        %vm1569 = vcmp.ge.s32.totalorder %v1559, 1
        %vm1570 = vcmp.ge.s32.totalorder %v1560, 1
        %vm1571 = vcmp.ge.s32.totalorder %v1561, 1
        %vm1572 = vcmp.ge.s32.totalorder %v1562, 1
        %vm1573 = vcmp.ge.s32.totalorder %v1563, 1
        %vm1574 = vcmp.lt.s32.totalorder %v1558, 17
        %vm1575 = vcmp.lt.s32.totalorder %v1559, 17
        %vm1576 = vcmp.lt.s32.totalorder %v1560, 17
        %vm1577 = vcmp.lt.s32.totalorder %v1561, 17
        %vm1578 = vcmp.lt.s32.totalorder %v1562, 17
        %vm1579 = vcmp.lt.s32.totalorder %v1563, 17
        %vm1580 = vmand %vm1568, %vm1574
        %vm1581 = vmand %vm1569, %vm1575
        %vm1582 = vmand %vm1570, %vm1576
        %vm1583 = vmand %vm1571, %vm1577
        %vm1584 = vmand %vm1572, %vm1578
        %vm1585 = vmand %vm1573, %vm1579
        %vm1586 = vcmp.ge.s32.totalorder %v1565, 1
        %vm1587 = vcmp.ge.s32.totalorder %v1566, 1
        %vm1588 = vcmp.ge.s32.totalorder %v1567, 1
        %vm1589 = vmand %vm1580, %vm1586
        %vm1590 = vmand %vm1580, %vm1587
        %vm1591 = vmand %vm1580, %vm1588
        %vm1592 = vmand %vm1581, %vm1586
        %vm1593 = vmand %vm1581, %vm1587
        %vm1594 = vmand %vm1581, %vm1588
        %vm1595 = vmand %vm1582, %vm1586
        %vm1596 = vmand %vm1582, %vm1587
        %vm1597 = vmand %vm1582, %vm1588
        %vm1598 = vmand %vm1583, %vm1586
        %vm1599 = vmand %vm1583, %vm1587
        %vm1600 = vmand %vm1583, %vm1588
        %vm1601 = vmand %vm1584, %vm1586
        %vm1602 = vmand %vm1584, %vm1587
        %vm1603 = vmand %vm1584, %vm1588
        %vm1604 = vmand %vm1585, %vm1586
        %vm1605 = vmand %vm1585, %vm1587
        %vm1606 = vmand %vm1585, %vm1588
        %vm1607 = vcmp.lt.s32.totalorder %v1565, 17
        %vm1608 = vcmp.lt.s32.totalorder %v1566, 17
        %vm1609 = vcmp.lt.s32.totalorder %v1567, 17
        %vm1610 = vmand %vm1589, %vm1607
        %vm1611 = vmand %vm1590, %vm1608
        %vm1612 = vmand %vm1591, %vm1609
        %vm1613 = vmand %vm1592, %vm1607
        %vm1614 = vmand %vm1593, %vm1608
        %vm1615 = vmand %vm1594, %vm1609
        %vm1616 = vmand %vm1595, %vm1607
        %vm1617 = vmand %vm1596, %vm1608
        %vm1618 = vmand %vm1597, %vm1609
        %vm1619 = vmand %vm1598, %vm1607
        %vm1620 = vmand %vm1599, %vm1608
        %vm1621 = vmand %vm1600, %vm1609
        %vm1622 = vmand %vm1601, %vm1607
        %vm1623 = vmand %vm1602, %vm1608
        %vm1624 = vmand %vm1603, %vm1609
        %vm1625 = vmand %vm1604, %vm1607
        %vm1626 = vmand %vm1605, %vm1608
        %vm1627 = vmand %vm1606, %vm1609
        %v1628 = vsel %vm1610, 1, 0
        %v1629 = vsel %vm1611, 1, 0
        %v1630 = vsel %vm1612, 1, 0
        %v1631 = vsel %vm1613, 1, 0
        %v1632 = vsel %vm1614, 1, 0
        %v1633 = vsel %vm1615, 1, 0
        %v1634 = vsel %vm1616, 1, 0
        %v1635 = vsel %vm1617, 1, 0
        %v1636 = vsel %vm1618, 1, 0
        %v1637 = vsel %vm1619, 1, 0
        %v1638 = vsel %vm1620, 1, 0
        %v1639 = vsel %vm1621, 1, 0
        %v1640 = vsel %vm1622, 1, 0
        %v1641 = vsel %vm1623, 1, 0
        %v1642 = vsel %vm1624, 1, 0
        %v1643 = vsel %vm1625, 1, 0
        %v1644 = vsel %vm1626, 1, 0
        %v1645 = vsel %vm1627, 1, 0
        %vm1646 = vcmp.eq.s32.totalorder %v1628, 1
        %vm1647 = vcmp.eq.s32.totalorder %v1629, 1
        %vm1648 = vcmp.eq.s32.totalorder %v1630, 1
        %vm1649 = vcmp.eq.s32.totalorder %v1631, 1
        %vm1650 = vcmp.eq.s32.totalorder %v1632, 1
        %vm1651 = vcmp.eq.s32.totalorder %v1633, 1
        %vm1652 = vcmp.eq.s32.totalorder %v1634, 1
        %vm1653 = vcmp.eq.s32.totalorder %v1635, 1
        %vm1654 = vcmp.eq.s32.totalorder %v1636, 1
        %vm1655 = vcmp.eq.s32.totalorder %v1637, 1
        %vm1656 = vcmp.eq.s32.totalorder %v1638, 1
        %vm1657 = vcmp.eq.s32.totalorder %v1639, 1
        %vm1658 = vcmp.eq.s32.totalorder %v1640, 1
        %vm1659 = vcmp.eq.s32.totalorder %v1641, 1
        %vm1660 = vcmp.eq.s32.totalorder %v1642, 1
        %vm1661 = vcmp.eq.s32.totalorder %v1643, 1
        %vm1662 = vcmp.eq.s32.totalorder %v1644, 1
        %vm1663 = vcmp.eq.s32.totalorder %v1645, 1
        %v1718 = vcombine.low %v1504, %v1505
        %v1719 = vcombine.low %v1506, %v1507
        %v1721 = vunpack.c.l.s4 1983009808
        %v1722 = vunpack.c.0.s8 %v1721
        %v1723 = vlaneseq
        %v1724 = vshrl.u32 %v1723, 7
        %v1725 = vsub.s32 %v1722, %v1724
        %v1726 = vrot.slane %v1718, %v1725
        %v1728 = vunpack.c.l.s4 1983009808
        %v1729 = vunpack.c.0.s8 %v1728
        %v1730 = vlaneseq
        %v1731 = vshrl.u32 %v1730, 7
        %v1732 = vsub.s32 %v1729, %v1731
        %v1733 = vrot.slane %v1719, %v1732
        %v1734 = vcombine.low %v1726, %v1733
        %v1735 = vcombine.low %v1508, %v1509
        %v1736 = vcombine.low %v1510, %v1511
        %v1738 = vunpack.c.l.s4 1983009808
        %v1739 = vunpack.c.0.s8 %v1738
        %v1740 = vlaneseq
        %v1741 = vshrl.u32 %v1740, 7
        %v1742 = vsub.s32 %v1739, %v1741
        %v1743 = vrot.slane %v1735, %v1742
        %v1745 = vunpack.c.l.s4 1983009808
        %v1746 = vunpack.c.0.s8 %v1745
        %v1747 = vlaneseq
        %v1748 = vshrl.u32 %v1747, 7
        %v1749 = vsub.s32 %v1746, %v1748
        %v1750 = vrot.slane %v1736, %v1749
        %v1751 = vcombine.low %v1743, %v1750
        %v1753 = vunpack.c.l.s4 1983009808
        %v1754 = vunpack.c.0.s8 %v1753
        %v1755 = vlaneseq
        %v1756 = vshrl.u32 %v1755, 7
        %v1757 = vsub.s32 %v1754, %v1756
        %v1758 = vrot.slane %v1512, %v1757
        %v1759 = vcombine.low %v1513, %v1514
        %v1760 = vcombine.low %v1515, %v1516
        %v1762 = vunpack.c.l.s4 1983009808
        %v1763 = vunpack.c.0.s8 %v1762
        %v1764 = vlaneseq
        %v1765 = vshrl.u32 %v1764, 7
        %v1766 = vsub.s32 %v1763, %v1765
        %v1767 = vrot.slane %v1759, %v1766
        %v1769 = vunpack.c.l.s4 1983009808
        %v1770 = vunpack.c.0.s8 %v1769
        %v1771 = vlaneseq
        %v1772 = vshrl.u32 %v1771, 7
        %v1773 = vsub.s32 %v1770, %v1772
        %v1774 = vrot.slane %v1760, %v1773
        %v1775 = vcombine.low %v1767, %v1774
        %v1776 = vcombine.low %v1517, %v1518
        %v1777 = vcombine.low %v1519, %v1520
        %v1779 = vunpack.c.l.s4 1983009808
        %v1780 = vunpack.c.0.s8 %v1779
        %v1781 = vlaneseq
        %v1782 = vshrl.u32 %v1781, 7
        %v1783 = vsub.s32 %v1780, %v1782
        %v1784 = vrot.slane %v1776, %v1783
        %v1786 = vunpack.c.l.s4 1983009808
        %v1787 = vunpack.c.0.s8 %v1786
        %v1788 = vlaneseq
        %v1789 = vshrl.u32 %v1788, 7
        %v1790 = vsub.s32 %v1787, %v1789
        %v1791 = vrot.slane %v1777, %v1790
        %v1792 = vcombine.low %v1784, %v1791
        %v1794 = vunpack.c.l.s4 1983009808
        %v1795 = vunpack.c.0.s8 %v1794
        %v1796 = vlaneseq
        %v1797 = vshrl.u32 %v1796, 7
        %v1798 = vsub.s32 %v1795, %v1797
        %v1799 = vrot.slane %v1521, %v1798
        %v1800 = vcombine.low %v1522, %v1523
        %v1801 = vcombine.low %v1524, %v1525
        %v1803 = vunpack.c.l.s4 1983009808
        %v1804 = vunpack.c.0.s8 %v1803
        %v1805 = vlaneseq
        %v1806 = vshrl.u32 %v1805, 7
        %v1807 = vsub.s32 %v1804, %v1806
        %v1808 = vrot.slane %v1800, %v1807
        %v1810 = vunpack.c.l.s4 1983009808
        %v1811 = vunpack.c.0.s8 %v1810
        %v1812 = vlaneseq
        %v1813 = vshrl.u32 %v1812, 7
        %v1814 = vsub.s32 %v1811, %v1813
        %v1815 = vrot.slane %v1801, %v1814
        %v1816 = vcombine.low %v1808, %v1815
        %v1817 = vcombine.low %v1526, %v1527
        %v1818 = vcombine.low %v1528, %v1529
        %v1820 = vunpack.c.l.s4 1983009808
        %v1821 = vunpack.c.0.s8 %v1820
        %v1822 = vlaneseq
        %v1823 = vshrl.u32 %v1822, 7
        %v1824 = vsub.s32 %v1821, %v1823
        %v1825 = vrot.slane %v1817, %v1824
        %v1827 = vunpack.c.l.s4 1983009808
        %v1828 = vunpack.c.0.s8 %v1827
        %v1829 = vlaneseq
        %v1830 = vshrl.u32 %v1829, 7
        %v1831 = vsub.s32 %v1828, %v1830
        %v1832 = vrot.slane %v1818, %v1831
        %v1833 = vcombine.low %v1825, %v1832
        %v1835 = vunpack.c.l.s4 1983009808
        %v1836 = vunpack.c.0.s8 %v1835
        %v1837 = vlaneseq
        %v1838 = vshrl.u32 %v1837, 7
        %v1839 = vsub.s32 %v1836, %v1838
        %v1840 = vrot.slane %v1530, %v1839
        %v1841 = vcombine.low %v1531, %v1532
        %v1842 = vcombine.low %v1533, %v1534
        %v1844 = vunpack.c.l.s4 1983009808
        %v1845 = vunpack.c.0.s8 %v1844
        %v1846 = vlaneseq
        %v1847 = vshrl.u32 %v1846, 7
        %v1848 = vsub.s32 %v1845, %v1847
        %v1849 = vrot.slane %v1841, %v1848
        %v1851 = vunpack.c.l.s4 1983009808
        %v1852 = vunpack.c.0.s8 %v1851
        %v1853 = vlaneseq
        %v1854 = vshrl.u32 %v1853, 7
        %v1855 = vsub.s32 %v1852, %v1854
        %v1856 = vrot.slane %v1842, %v1855
        %v1857 = vcombine.low %v1849, %v1856
        %v1858 = vcombine.low %v1535, %v1536
        %v1859 = vcombine.low %v1537, %v1538
        %v1861 = vunpack.c.l.s4 1983009808
        %v1862 = vunpack.c.0.s8 %v1861
        %v1863 = vlaneseq
        %v1864 = vshrl.u32 %v1863, 7
        %v1865 = vsub.s32 %v1862, %v1864
        %v1866 = vrot.slane %v1858, %v1865
        %v1868 = vunpack.c.l.s4 1983009808
        %v1869 = vunpack.c.0.s8 %v1868
        %v1870 = vlaneseq
        %v1871 = vshrl.u32 %v1870, 7
        %v1872 = vsub.s32 %v1869, %v1871
        %v1873 = vrot.slane %v1859, %v1872
        %v1874 = vcombine.low %v1866, %v1873
        %v1876 = vunpack.c.l.s4 1983009808
        %v1877 = vunpack.c.0.s8 %v1876
        %v1878 = vlaneseq
        %v1879 = vshrl.u32 %v1878, 7
        %v1880 = vsub.s32 %v1877, %v1879
        %v1881 = vrot.slane %v1539, %v1880
        %v1882 = vcombine.low %v1540, %v1541
        %v1883 = vcombine.low %v1542, %v1543
        %v1885 = vunpack.c.l.s4 1983009808
        %v1886 = vunpack.c.0.s8 %v1885
        %v1887 = vlaneseq
        %v1888 = vshrl.u32 %v1887, 7
        %v1889 = vsub.s32 %v1886, %v1888
        %v1890 = vrot.slane %v1882, %v1889
        %v1892 = vunpack.c.l.s4 1983009808
        %v1893 = vunpack.c.0.s8 %v1892
        %v1894 = vlaneseq
        %v1895 = vshrl.u32 %v1894, 7
        %v1896 = vsub.s32 %v1893, %v1895
        %v1897 = vrot.slane %v1883, %v1896
        %v1898 = vcombine.low %v1890, %v1897
        %v1899 = vcombine.low %v1544, %v1545
        %v1900 = vcombine.low %v1546, %v1547
        %v1902 = vunpack.c.l.s4 1983009808
        %v1903 = vunpack.c.0.s8 %v1902
        %v1904 = vlaneseq
        %v1905 = vshrl.u32 %v1904, 7
        %v1906 = vsub.s32 %v1903, %v1905
        %v1907 = vrot.slane %v1899, %v1906
        %v1909 = vunpack.c.l.s4 1983009808
        %v1910 = vunpack.c.0.s8 %v1909
        %v1911 = vlaneseq
        %v1912 = vshrl.u32 %v1911, 7
        %v1913 = vsub.s32 %v1910, %v1912
        %v1914 = vrot.slane %v1900, %v1913
        %v1915 = vcombine.low %v1907, %v1914
        %v1917 = vunpack.c.l.s4 1983009808
        %v1918 = vunpack.c.0.s8 %v1917
        %v1919 = vlaneseq
        %v1920 = vshrl.u32 %v1919, 7
        %v1921 = vsub.s32 %v1918, %v1920
        %v1922 = vrot.slane %v1548, %v1921
        %v1923 = vcombine.low %v1549, %v1550
        %v1924 = vcombine.low %v1551, %v1552
        %v1926 = vunpack.c.l.s4 1983009808
        %v1927 = vunpack.c.0.s8 %v1926
        %v1928 = vlaneseq
        %v1929 = vshrl.u32 %v1928, 7
        %v1930 = vsub.s32 %v1927, %v1929
        %v1931 = vrot.slane %v1923, %v1930
        %v1933 = vunpack.c.l.s4 1983009808
        %v1934 = vunpack.c.0.s8 %v1933
        %v1935 = vlaneseq
        %v1936 = vshrl.u32 %v1935, 7
        %v1937 = vsub.s32 %v1934, %v1936
        %v1938 = vrot.slane %v1924, %v1937
        %v1939 = vcombine.low %v1931, %v1938
        %v1940 = vcombine.low %v1553, %v1554
        %v1941 = vcombine.low %v1555, %v1556
        %v1943 = vunpack.c.l.s4 1983009808
        %v1944 = vunpack.c.0.s8 %v1943
        %v1945 = vlaneseq
        %v1946 = vshrl.u32 %v1945, 7
        %v1947 = vsub.s32 %v1944, %v1946
        %v1948 = vrot.slane %v1940, %v1947
        %v1950 = vunpack.c.l.s4 1983009808
        %v1951 = vunpack.c.0.s8 %v1950
        %v1952 = vlaneseq
        %v1953 = vshrl.u32 %v1952, 7
        %v1954 = vsub.s32 %v1951, %v1953
        %v1955 = vrot.slane %v1941, %v1954
        %v1956 = vcombine.low %v1948, %v1955
        %v1958 = vunpack.c.l.s4 1983009808
        %v1959 = vunpack.c.0.s8 %v1958
        %v1960 = vlaneseq
        %v1961 = vshrl.u32 %v1960, 7
        %v1962 = vsub.s32 %v1959, %v1961
        %v1963 = vrot.slane %v1557, %v1962
        %v1982 = vsel %vm1646, %v1734, 0.0
        %v1983 = vsel %vm1647, %v1751, 0.0
        %v1984 = vsel %vm1648, %v1758, 0.0
        %v1985 = vsel %vm1649, %v1775, 0.0
        %v1986 = vsel %vm1650, %v1792, 0.0
        %v1987 = vsel %vm1651, %v1799, 0.0
        %v1988 = vsel %vm1652, %v1816, 0.0
        %v1989 = vsel %vm1653, %v1833, 0.0
        %v1990 = vsel %vm1654, %v1840, 0.0
        %v1991 = vsel %vm1655, %v1857, 0.0
        %v1992 = vsel %vm1656, %v1874, 0.0
        %v1993 = vsel %vm1657, %v1881, 0.0
        %v1994 = vsel %vm1658, %v1898, 0.0
        %v1995 = vsel %vm1659, %v1915, 0.0
        %v1996 = vsel %vm1660, %v1922, 0.0
        %v1997 = vsel %vm1661, %v1939, 0.0
        %v1998 = vsel %vm1662, %v1956, 0.0
        %v1999 = vsel %vm1663, %v1963, 0.0
        %v2000 = vld [vmem:[#allocation8] sm:$0x7]
        %v2001 = vld [vmem:[#allocation8 + $0x4] sm:$0x7]
        %v2002 = vld [vmem:[#allocation8 + $0x8] sm:$0x7]
        %v2003 = vld [vmem:[#allocation10] sm:$0x1]
        %v2004 = vlaneseq
        %v2005 = vshrl.u32 %v2004, 7
        %v2006 = vsub.s32 0, %v2005
        %v2007 = vrot.slane %v2000, %v2006
        %v2008 = vmul.f32 %v1982, %v2007
        %v2009 = vmul.f32 %v1983, %v2007
        %v2010 = vmul.f32 %v1985, %v2007
        %v2011 = vmul.f32 %v1986, %v2007
        %v2012 = vmul.f32 %v1988, %v2007
        %v2013 = vmul.f32 %v1989, %v2007
        %v2014 = vmul.f32 %v1991, %v2007
        %v2015 = vmul.f32 %v1992, %v2007
        %v2016 = vadd.f32 %v2008, 0.0
        %v2017 = vadd.f32 %v2009, 0.0
        %v2018 = vadd.f32 %v2010, 0.0
        %v2019 = vadd.f32 %v2011, 0.0
        %v2020 = vadd.f32 %v2012, 0.0
        %v2021 = vadd.f32 %v2013, 0.0
        %v2022 = vadd.f32 %v2014, 0.0
        %v2023 = vadd.f32 %v2015, 0.0
        %v2024 = vlaneseq
        %v2025 = vshrl.u32 %v2024, 7
        %v2026 = vsub.s32 1, %v2025
        %v2027 = vrot.slane %v2000, %v2026
        %v2028 = vmul.f32 %v1982, %v2027
        %v2029 = vmul.f32 %v1983, %v2027
        %v2030 = vmul.f32 %v1984, %v2027
        %v2031 = vmul.f32 %v1985, %v2027
        %v2032 = vmul.f32 %v1986, %v2027
        %v2033 = vmul.f32 %v1987, %v2027
        %v2034 = vmul.f32 %v1988, %v2027
        %v2035 = vmul.f32 %v1989, %v2027
        %v2036 = vmul.f32 %v1990, %v2027
        %v2037 = vmul.f32 %v1991, %v2027
        %v2038 = vmul.f32 %v1992, %v2027
        %v2039 = vmul.f32 %v1993, %v2027
        %vm2052 = vcmask 1046528
        %v2053 = vrot.slane %v2028, 1
        %v2054 = vrot.slane %v2029, 1
        %v2055 = vsel %vm2052, %v2053, %v2054
        %v2056 = vrot.slane %v2030, 1
        %v2057 = vsel %vm2052, %v2054, %v2056
        %v2058 = vrot.slane %v2031, 1
        %v2059 = vrot.slane %v2032, 1
        %v2060 = vsel %vm2052, %v2058, %v2059
        %v2061 = vrot.slane %v2033, 1
        %v2062 = vsel %vm2052, %v2059, %v2061
        %v2063 = vrot.slane %v2034, 1
        %v2064 = vrot.slane %v2035, 1
        %v2065 = vsel %vm2052, %v2063, %v2064
        %v2066 = vrot.slane %v2036, 1
        %v2067 = vsel %vm2052, %v2064, %v2066
        %v2068 = vrot.slane %v2037, 1
        %v2069 = vrot.slane %v2038, 1
        %v2070 = vsel %vm2052, %v2068, %v2069
        %v2071 = vrot.slane %v2039, 1
        %v2072 = vsel %vm2052, %v2069, %v2071
        %v2081 = vadd.f32 %v2016, %v2055
        %v2082 = vadd.f32 %v2017, %v2057
        %v2083 = vadd.f32 %v2018, %v2060
        %v2084 = vadd.f32 %v2019, %v2062
        %v2085 = vadd.f32 %v2020, %v2065
        %v2086 = vadd.f32 %v2021, %v2067
        %v2087 = vadd.f32 %v2022, %v2070
        %v2088 = vadd.f32 %v2023, %v2072
        %v2089 = vlaneseq
        %v2090 = vshrl.u32 %v2089, 7
        %v2091 = vsub.s32 2, %v2090
        %v2092 = vrot.slane %v2000, %v2091
        %v2093 = vmul.f32 %v1982, %v2092
        %v2094 = vmul.f32 %v1983, %v2092
        %v2095 = vmul.f32 %v1984, %v2092
        %v2096 = vmul.f32 %v1985, %v2092
        %v2097 = vmul.f32 %v1986, %v2092
        %v2098 = vmul.f32 %v1987, %v2092
        %v2099 = vmul.f32 %v1988, %v2092
        %v2100 = vmul.f32 %v1989, %v2092
        %v2101 = vmul.f32 %v1990, %v2092
        %v2102 = vmul.f32 %v1991, %v2092
        %v2103 = vmul.f32 %v1992, %v2092
        %v2104 = vmul.f32 %v1993, %v2092
        %vm2117 = vcmask 1045504
        %v2118 = vrot.slane %v2093, 2
        %v2119 = vrot.slane %v2094, 2
        %v2120 = vsel %vm2117, %v2118, %v2119
        %v2121 = vrot.slane %v2095, 2
        %v2122 = vsel %vm2117, %v2119, %v2121
        %v2123 = vrot.slane %v2096, 2
        %v2124 = vrot.slane %v2097, 2
        %v2125 = vsel %vm2117, %v2123, %v2124
        %v2126 = vrot.slane %v2098, 2
        %v2127 = vsel %vm2117, %v2124, %v2126
        %v2128 = vrot.slane %v2099, 2
        %v2129 = vrot.slane %v2100, 2
        %v2130 = vsel %vm2117, %v2128, %v2129
        %v2131 = vrot.slane %v2101, 2
        %v2132 = vsel %vm2117, %v2129, %v2131
        %v2133 = vrot.slane %v2102, 2
        %v2134 = vrot.slane %v2103, 2
        %v2135 = vsel %vm2117, %v2133, %v2134
        %v2136 = vrot.slane %v2104, 2
        %v2137 = vsel %vm2117, %v2134, %v2136
        %v2146 = vadd.f32 %v2081, %v2120
        %v2147 = vadd.f32 %v2082, %v2122
        %v2148 = vadd.f32 %v2083, %v2125
        %v2149 = vadd.f32 %v2084, %v2127
        %v2150 = vadd.f32 %v2085, %v2130
        %v2151 = vadd.f32 %v2086, %v2132
        %v2152 = vadd.f32 %v2087, %v2135
        %v2153 = vadd.f32 %v2088, %v2137
        %v2154 = vlaneseq
        %v2155 = vshrl.u32 %v2154, 7
        %v2156 = vsub.s32 0, %v2155
        %v2157 = vrot.slane %v2001, %v2156
        %v2158 = vmul.f32 %v1985, %v2157
        %v2159 = vmul.f32 %v1986, %v2157
        %v2160 = vmul.f32 %v1988, %v2157
        %v2161 = vmul.f32 %v1989, %v2157
        %v2162 = vmul.f32 %v1991, %v2157
        %v2163 = vmul.f32 %v1992, %v2157
        %v2164 = vmul.f32 %v1994, %v2157
        %v2165 = vmul.f32 %v1995, %v2157
        %v2166 = vadd.f32 %v2146, %v2158
        %v2167 = vadd.f32 %v2147, %v2159
        %v2168 = vadd.f32 %v2148, %v2160
        %v2169 = vadd.f32 %v2149, %v2161
        %v2170 = vadd.f32 %v2150, %v2162
        %v2171 = vadd.f32 %v2151, %v2163
        %v2172 = vadd.f32 %v2152, %v2164
        %v2173 = vadd.f32 %v2153, %v2165
        %v2174 = vlaneseq
        %v2175 = vshrl.u32 %v2174, 7
        %v2176 = vsub.s32 1, %v2175
        %v2177 = vrot.slane %v2001, %v2176
        %v2178 = vmul.f32 %v1985, %v2177
        %v2179 = vmul.f32 %v1986, %v2177
        %v2180 = vmul.f32 %v1987, %v2177
        %v2181 = vmul.f32 %v1988, %v2177
        %v2182 = vmul.f32 %v1989, %v2177
        %v2183 = vmul.f32 %v1990, %v2177
        %v2184 = vmul.f32 %v1991, %v2177
        %v2185 = vmul.f32 %v1992, %v2177
        %v2186 = vmul.f32 %v1993, %v2177
        %v2187 = vmul.f32 %v1994, %v2177
        %v2188 = vmul.f32 %v1995, %v2177
        %v2189 = vmul.f32 %v1996, %v2177
        %v2202 = vrot.slane %v2178, 1
        %v2203 = vrot.slane %v2179, 1
        %v2204 = vsel %vm2052, %v2202, %v2203
        %v2205 = vrot.slane %v2180, 1
        %v2206 = vsel %vm2052, %v2203, %v2205
        %v2207 = vrot.slane %v2181, 1
        %v2208 = vrot.slane %v2182, 1
        %v2209 = vsel %vm2052, %v2207, %v2208
        %v2210 = vrot.slane %v2183, 1
        %v2211 = vsel %vm2052, %v2208, %v2210
        %v2212 = vrot.slane %v2184, 1
        %v2213 = vrot.slane %v2185, 1
        %v2214 = vsel %vm2052, %v2212, %v2213
        %v2215 = vrot.slane %v2186, 1
        %v2216 = vsel %vm2052, %v2213, %v2215
        %v2217 = vrot.slane %v2187, 1
        %v2218 = vrot.slane %v2188, 1
        %v2219 = vsel %vm2052, %v2217, %v2218
        %v2220 = vrot.slane %v2189, 1
        %v2221 = vsel %vm2052, %v2218, %v2220
        %v2230 = vadd.f32 %v2166, %v2204
        %v2231 = vadd.f32 %v2167, %v2206
        %v2232 = vadd.f32 %v2168, %v2209
        %v2233 = vadd.f32 %v2169, %v2211
        %v2234 = vadd.f32 %v2170, %v2214
        %v2235 = vadd.f32 %v2171, %v2216
        %v2236 = vadd.f32 %v2172, %v2219
        %v2237 = vadd.f32 %v2173, %v2221
        %v2238 = vlaneseq
        %v2239 = vshrl.u32 %v2238, 7
        %v2240 = vsub.s32 2, %v2239
        %v2241 = vrot.slane %v2001, %v2240
        %v2242 = vmul.f32 %v1985, %v2241
        %v2243 = vmul.f32 %v1986, %v2241
        %v2244 = vmul.f32 %v1987, %v2241
        %v2245 = vmul.f32 %v1988, %v2241
        %v2246 = vmul.f32 %v1989, %v2241
        %v2247 = vmul.f32 %v1990, %v2241
        %v2248 = vmul.f32 %v1991, %v2241
        %v2249 = vmul.f32 %v1992, %v2241
        %v2250 = vmul.f32 %v1993, %v2241
        %v2251 = vmul.f32 %v1994, %v2241
        %v2252 = vmul.f32 %v1995, %v2241
        %v2253 = vmul.f32 %v1996, %v2241
        %v2266 = vrot.slane %v2242, 2
        %v2267 = vrot.slane %v2243, 2
        %v2268 = vsel %vm2117, %v2266, %v2267
        %v2269 = vrot.slane %v2244, 2
        %v2270 = vsel %vm2117, %v2267, %v2269
        %v2271 = vrot.slane %v2245, 2
        %v2272 = vrot.slane %v2246, 2
        %v2273 = vsel %vm2117, %v2271, %v2272
        %v2274 = vrot.slane %v2247, 2
        %v2275 = vsel %vm2117, %v2272, %v2274
        %v2276 = vrot.slane %v2248, 2
        %v2277 = vrot.slane %v2249, 2
        %v2278 = vsel %vm2117, %v2276, %v2277
        %v2279 = vrot.slane %v2250, 2
        %v2280 = vsel %vm2117, %v2277, %v2279
        %v2281 = vrot.slane %v2251, 2
        %v2282 = vrot.slane %v2252, 2
        %v2283 = vsel %vm2117, %v2281, %v2282
        %v2284 = vrot.slane %v2253, 2
        %v2285 = vsel %vm2117, %v2282, %v2284
        %v2294 = vadd.f32 %v2230, %v2268
        %v2295 = vadd.f32 %v2231, %v2270
        %v2296 = vadd.f32 %v2232, %v2273
        %v2297 = vadd.f32 %v2233, %v2275
        %v2298 = vadd.f32 %v2234, %v2278
        %v2299 = vadd.f32 %v2235, %v2280
        %v2300 = vadd.f32 %v2236, %v2283
        %v2301 = vadd.f32 %v2237, %v2285
        %v2302 = vlaneseq
        %v2303 = vshrl.u32 %v2302, 7
        %v2304 = vsub.s32 0, %v2303
        %v2305 = vrot.slane %v2002, %v2304
        %v2306 = vmul.f32 %v1988, %v2305
        %v2307 = vmul.f32 %v1989, %v2305
        %v2308 = vmul.f32 %v1991, %v2305
        %v2309 = vmul.f32 %v1992, %v2305
        %v2310 = vmul.f32 %v1994, %v2305
        %v2311 = vmul.f32 %v1995, %v2305
        %v2312 = vmul.f32 %v1997, %v2305
        %v2313 = vmul.f32 %v1998, %v2305
        %v2314 = vadd.f32 %v2294, %v2306
        %v2315 = vadd.f32 %v2295, %v2307
        %v2316 = vadd.f32 %v2296, %v2308
        %v2317 = vadd.f32 %v2297, %v2309
        %v2318 = vadd.f32 %v2298, %v2310
        %v2319 = vadd.f32 %v2299, %v2311
        %v2320 = vadd.f32 %v2300, %v2312
        %v2321 = vadd.f32 %v2301, %v2313
        %v2322 = vlaneseq
        %v2323 = vshrl.u32 %v2322, 7
        %v2324 = vsub.s32 1, %v2323
        %v2325 = vrot.slane %v2002, %v2324
        %v2326 = vmul.f32 %v1988, %v2325
        %v2327 = vmul.f32 %v1989, %v2325
        %v2328 = vmul.f32 %v1990, %v2325
        %v2329 = vmul.f32 %v1991, %v2325
        %v2330 = vmul.f32 %v1992, %v2325
        %v2331 = vmul.f32 %v1993, %v2325
        %v2332 = vmul.f32 %v1994, %v2325
        %v2333 = vmul.f32 %v1995, %v2325
        %v2334 = vmul.f32 %v1996, %v2325
        %v2335 = vmul.f32 %v1997, %v2325
        %v2336 = vmul.f32 %v1998, %v2325
        %v2337 = vmul.f32 %v1999, %v2325
        %v2350 = vrot.slane %v2326, 1
        %v2351 = vrot.slane %v2327, 1
        %v2352 = vsel %vm2052, %v2350, %v2351
        %v2353 = vrot.slane %v2328, 1
        %v2354 = vsel %vm2052, %v2351, %v2353
        %v2355 = vrot.slane %v2329, 1
        %v2356 = vrot.slane %v2330, 1
        %v2357 = vsel %vm2052, %v2355, %v2356
        %v2358 = vrot.slane %v2331, 1
        %v2359 = vsel %vm2052, %v2356, %v2358
        %v2360 = vrot.slane %v2332, 1
        %v2361 = vrot.slane %v2333, 1
        %v2362 = vsel %vm2052, %v2360, %v2361
        %v2363 = vrot.slane %v2334, 1
        %v2364 = vsel %vm2052, %v2361, %v2363
        %v2365 = vrot.slane %v2335, 1
        %v2366 = vrot.slane %v2336, 1
        %v2367 = vsel %vm2052, %v2365, %v2366
        %v2368 = vrot.slane %v2337, 1
        %v2369 = vsel %vm2052, %v2366, %v2368
        %v2378 = vadd.f32 %v2314, %v2352
        %v2379 = vadd.f32 %v2315, %v2354
        %v2380 = vadd.f32 %v2316, %v2357
        %v2381 = vadd.f32 %v2317, %v2359
        %v2382 = vadd.f32 %v2318, %v2362
        %v2383 = vadd.f32 %v2319, %v2364
        %v2384 = vadd.f32 %v2320, %v2367
        %v2385 = vadd.f32 %v2321, %v2369
        %v2386 = vlaneseq
        %v2387 = vshrl.u32 %v2386, 7
        %v2388 = vsub.s32 2, %v2387
        %v2389 = vrot.slane %v2002, %v2388
        %v2390 = vmul.f32 %v1988, %v2389
        %v2391 = vmul.f32 %v1989, %v2389
        %v2392 = vmul.f32 %v1990, %v2389
        %v2393 = vmul.f32 %v1991, %v2389
        %v2394 = vmul.f32 %v1992, %v2389
        %v2395 = vmul.f32 %v1993, %v2389
        %v2396 = vmul.f32 %v1994, %v2389
        %v2397 = vmul.f32 %v1995, %v2389
        %v2398 = vmul.f32 %v1996, %v2389
        %v2399 = vmul.f32 %v1997, %v2389
        %v2400 = vmul.f32 %v1998, %v2389
        %v2401 = vmul.f32 %v1999, %v2389
        %v2414 = vrot.slane %v2390, 2
        %v2415 = vrot.slane %v2391, 2
        %v2416 = vsel %vm2117, %v2414, %v2415
        %v2417 = vrot.slane %v2392, 2
        %v2418 = vsel %vm2117, %v2415, %v2417
        %v2419 = vrot.slane %v2393, 2
        %v2420 = vrot.slane %v2394, 2
        %v2421 = vsel %vm2117, %v2419, %v2420
        %v2422 = vrot.slane %v2395, 2
        %v2423 = vsel %vm2117, %v2420, %v2422
        %v2424 = vrot.slane %v2396, 2
        %v2425 = vrot.slane %v2397, 2
        %v2426 = vsel %vm2117, %v2424, %v2425
        %v2427 = vrot.slane %v2398, 2
        %v2428 = vsel %vm2117, %v2425, %v2427
        %v2429 = vrot.slane %v2399, 2
        %v2430 = vrot.slane %v2400, 2
        %v2431 = vsel %vm2117, %v2429, %v2430
        %v2432 = vrot.slane %v2401, 2
        %v2433 = vsel %vm2117, %v2430, %v2432
        %v2442 = vadd.f32 %v2378, %v2416
        %v2443 = vadd.f32 %v2379, %v2418
        %v2444 = vadd.f32 %v2380, %v2421
        %v2445 = vadd.f32 %v2381, %v2423
        %v2446 = vadd.f32 %v2382, %v2426
        %v2447 = vadd.f32 %v2383, %v2428
        %v2448 = vadd.f32 %v2384, %v2431
        %v2449 = vadd.f32 %v2385, %v2433
        %v2451 = vlaneseq
        %v2452 = vshrl.u32 %v2451, 7
        %v2453 = vsub.s32 0, %v2452
        %v2454 = vrot.slane %v2003, %v2453
        %v2456 = vadd.f32 %v2442, %v2454
        %v2457 = vadd.f32 %v2443, %v2454
        %v2458 = vadd.f32 %v2444, %v2454
        %v2459 = vadd.f32 %v2445, %v2454
        %v2460 = vadd.f32 %v2446, %v2454
        %v2461 = vadd.f32 %v2447, %v2454
        %v2462 = vadd.f32 %v2448, %v2454
        %v2463 = vadd.f32 %v2449, %v2454
        %v2464 = vmax.f32 %v2456, 0.0
        %v2465 = vmax.f32 %v2457, 0.0
        %v2466 = vmax.f32 %v2458, 0.0
        %v2467 = vmax.f32 %v2459, 0.0
        %v2468 = vmax.f32 %v2460, 0.0
        %v2469 = vmax.f32 %v2461, 0.0
        %v2470 = vmax.f32 %v2462, 0.0
        %v2471 = vmax.f32 %v2463, 0.0
        %v2472 = vmin.f32 %v2464, 6.0
        %v2473 = vmin.f32 %v2465, 6.0
        %v2474 = vmin.f32 %v2466, 6.0
        %v2475 = vmin.f32 %v2467, 6.0
        %v2476 = vmin.f32 %v2468, 6.0
        %v2477 = vmin.f32 %v2469, 6.0
        %v2478 = vmin.f32 %v2470, 6.0
        %v2479 = vmin.f32 %v2471, 6.0
        %v2480 = vld [vmem:[#allocation11] sm:$0xff]
        %v2481 = vld [vmem:[#allocation11 + $0x8] sm:$0xff]
        %v2482 = vld [vmem:[#allocation11 + $0x10] sm:$0xff]
        %v2483 = vld [vmem:[#allocation11 + $0x18] sm:$0xff]
        %v2484 = vld [vmem:[#allocation11 + $0x20] sm:$0xff]
        %v2485 = vld [vmem:[#allocation11 + $0x28] sm:$0xff]
        %v2486 = vld [vmem:[#allocation11 + $0x30] sm:$0xff]
        %v2487 = vld [vmem:[#allocation11 + $0x38] sm:$0xff]
        %v2488 = vld [vmem:[#allocation11 + $0x40] sm:$0xff]
        %v2489 = vld [vmem:[#allocation11 + $0x48] sm:$0xff]
        %v2490 = vld [vmem:[#allocation11 + $0x50] sm:$0xff]
        %v2491 = vld [vmem:[#allocation11 + $0x58] sm:$0xff]
        %v2492 = vld [vmem:[#allocation11 + $0x60] sm:$0xff]
        %v2493 = vld [vmem:[#allocation11 + $0x68] sm:$0xff]
        %v2494 = vld [vmem:[#allocation11 + $0x70] sm:$0xff]
        %v2495 = vld [vmem:[#allocation11 + $0x78] sm:$0xff]
        %2496 = vmatprep.subr.mxu0 0.0
        %2497 = vmatpush1.msra.mxu0 %v2480
        %2498 = vmatprep.subr.mxu0 0.0
        %2499 = vmatpush1.msra.mxu0 %v2481
        %2500 = vmatprep.subr.mxu0 0.0
        %2501 = vmatpush1.msra.mxu0 %v2482
        %2502 = vmatprep.subr.mxu0 0.0
        %2503 = vmatpush1.msra.mxu0 %v2483
        %2504 = vmatprep.subr.mxu0 0.0
        %2505 = vmatpush1.msra.mxu0 %v2484
        %2506 = vmatprep.subr.mxu0 0.0
        %2507 = vmatpush1.msra.mxu0 %v2485
        %2508 = vmatprep.subr.mxu0 0.0
        %2509 = vmatpush1.msra.mxu0 %v2486
        %2510 = vmatprep.subr.mxu0 0.0
        %2511 = vmatpush1.msra.mxu0 %v2487
        %2512 = vmatprep.subr.mxu0 0.0
        %2513 = vmatpush1.msra.mxu0 %v2488
        %2514 = vmatprep.subr.mxu0 0.0
        %2515 = vmatpush1.msra.mxu0 %v2489
        %2516 = vmatprep.subr.mxu0 0.0
        %2517 = vmatpush1.msra.mxu0 %v2490
        %2518 = vmatprep.subr.mxu0 0.0
        %2519 = vmatpush1.msra.mxu0 %v2491
        %2520 = vmatprep.subr.mxu0 0.0
        %2521 = vmatpush1.msra.mxu0 %v2492
        %2522 = vmatprep.subr.mxu0 0.0
        %2523 = vmatpush1.msra.mxu0 %v2493
        %2524 = vmatprep.subr.mxu0 0.0
        %2525 = vmatpush1.msra.mxu0 %v2494
        %2526 = vmatprep.subr.mxu0 0.0
        %2527 = vmatpush1.msra.mxu0 %v2495
        %2528 = vmatprep.subr.mxu0 0.0
        %2529 = vmatpush1.msra.mxu0 0.0
        %2530 = vmatprep.subr.mxu0 0.0
        %2531 = vmatpush1.msra.mxu0 0.0
        %2532 = vmatprep.subr.mxu0 0.0
        %2533 = vmatpush1.msra.mxu0 0.0
        %2534 = vmatprep.subr.mxu0 0.0
        %2535 = vmatpush1.msra.mxu0 0.0
        %2536 = vmatprep.subr.mxu0 0.0
        %2537 = vmatpush1.msra.mxu0 0.0
        %2538 = vmatprep.subr.mxu0 0.0
        %2539 = vmatpush1.msra.mxu0 0.0
        %2540 = vmatprep.subr.mxu0 0.0
        %2541 = vmatpush1.msra.mxu0 0.0
        %2542 = vmatprep.subr.mxu0 0.0
        %2543 = vmatpush1.msra.mxu0 0.0
        %2544 = vmatprep.subr.mxu0 0.0
        %2545 = vmatpush1.msra.mxu0 0.0
        %2546 = vmatprep.subr.mxu0 0.0
        %2547 = vmatpush1.msra.mxu0 0.0
        %2548 = vmatprep.subr.mxu0 0.0
        %2549 = vmatpush1.msra.mxu0 0.0
        %2550 = vmatprep.subr.mxu0 0.0
        %2551 = vmatpush1.msra.mxu0 0.0
        %2552 = vmatprep.subr.mxu0 0.0
        %2553 = vmatpush1.msra.mxu0 0.0
        %2554 = vmatprep.subr.mxu0 0.0
        %2555 = vmatpush1.msra.mxu0 0.0
        %2556 = vmatprep.subr.mxu0 0.0
        %2557 = vmatpush1.msra.mxu0 0.0
        %2558 = vmatprep.subr.mxu0 0.0
        %2559 = vmatpush1.msra.mxu0 0.0
        %2560 = vmatprep.mubr.f32.mxu0 0.0
        %2561 = vmatmul.mubr.f32.gmra.mrb[0].mxu0 %v2472
        %v2562 = vpop.f32.mrb[0].mxu0
        %v2563 = vadd.f32 0.0, %v2562
        %v2564 = vpop.f32.mrb[0].mxu0
        %2565 = vmatprep.mubr.f32.mxu0 0.0
        %2566 = vmatmul.mubr.f32.gmra.mrb[0].mxu0 %v2473
        %v2567 = vpop.f32.mrb[0].mxu0
        %v2568 = vadd.f32 0.0, %v2567
        %v2569 = vpop.f32.mrb[0].mxu0
        %2570 = vmatprep.mubr.f32.mxu0 0.0
        %2571 = vmatmul.mubr.f32.gmra.mrb[0].mxu0 %v2474
        %v2572 = vpop.f32.mrb[0].mxu0
        %v2573 = vadd.f32 0.0, %v2572
        %v2574 = vpop.f32.mrb[0].mxu0
        %2575 = vmatprep.mubr.f32.mxu0 0.0
        %2576 = vmatmul.mubr.f32.gmra.mrb[0].mxu0 %v2475
        %v2577 = vpop.f32.mrb[0].mxu0
        %v2578 = vadd.f32 0.0, %v2577
        %v2579 = vpop.f32.mrb[0].mxu0
        %2580 = vmatprep.mubr.f32.mxu0 0.0
        %2581 = vmatmul.mubr.f32.gmra.mrb[0].mxu0 %v2476
        %v2582 = vpop.f32.mrb[0].mxu0
        %v2583 = vadd.f32 0.0, %v2582
        %v2584 = vpop.f32.mrb[0].mxu0
        %2585 = vmatprep.mubr.f32.mxu0 0.0
        %2586 = vmatmul.mubr.f32.gmra.mrb[0].mxu0 %v2477
        %v2587 = vpop.f32.mrb[0].mxu0
        %v2588 = vadd.f32 0.0, %v2587
        %v2589 = vpop.f32.mrb[0].mxu0
        %2590 = vmatprep.mubr.f32.mxu0 0.0
        %2591 = vmatmul.mubr.f32.gmra.mrb[0].mxu0 %v2478
        %v2592 = vpop.f32.mrb[0].mxu0
        %v2593 = vadd.f32 0.0, %v2592
        %v2594 = vpop.f32.mrb[0].mxu0
        %2595 = vmatprep.mubr.f32.mxu0 0.0
        %2596 = vmatmul.mubr.f32.gmra.mrb[0].mxu0 %v2479
        %v2597 = vpop.f32.mrb[0].mxu0
        %v2598 = vadd.f32 0.0, %v2597
        %v2599 = vpop.f32.mrb[0].mxu0
        %2600 = vdwg.mxu0
        %v2601 = vld [vmem:[#allocation13] sm:$0x1]
        %v2603 = vlaneseq
        %v2604 = vshrl.u32 %v2603, 7
        %v2605 = vsub.s32 0, %v2604
        %v2606 = vrot.slane %v2601, %v2605
        %v2608 = vadd.f32 %v2563, %v2606
        %v2609 = vadd.f32 %v2568, %v2606
        %v2610 = vadd.f32 %v2573, %v2606
        %v2611 = vadd.f32 %v2578, %v2606
        %v2612 = vadd.f32 %v2583, %v2606
        %v2613 = vadd.f32 %v2588, %v2606
        %v2614 = vadd.f32 %v2593, %v2606
        %v2615 = vadd.f32 %v2598, %v2606
        %v2616 = vrot.slane %v399, 1
        %v2617 = vrot.slane %v400, 1
        %v2618 = vsel %vm2052, %v2616, %v2617
        %v2619 = vrot.slane %v401, 1
        %v2620 = vsel %vm2052, %v2617, %v2619
        %v2621 = vrot.slane %v402, 1
        %v2622 = vrot.slane %v403, 1
        %v2623 = vsel %vm2052, %v2621, %v2622
        %v2624 = vrot.slane %v404, 1
        %v2625 = vsel %vm2052, %v2622, %v2624
        %v2626 = vrot.slane %v405, 1
        %v2627 = vrot.slane %v406, 1
        %v2628 = vsel %vm2052, %v2626, %v2627
        %v2629 = vrot.slane %v407, 1
        %v2630 = vsel %vm2052, %v2627, %v2629
        %v2631 = vrot.slane %v408, 1
        %v2632 = vrot.slane %v409, 1
        %v2633 = vsel %vm2052, %v2631, %v2632
        %v2634 = vrot.slane %v410, 1
        %v2635 = vsel %vm2052, %v2632, %v2634
        %v2644 = vadd.f32 %v2608, %v2618
        %v2645 = vadd.f32 %v2609, %v2620
        %v2646 = vadd.f32 %v2610, %v2623
        %v2647 = vadd.f32 %v2611, %v2625
        %v2648 = vadd.f32 %v2612, %v2628
        %v2649 = vadd.f32 %v2613, %v2630
        %v2650 = vadd.f32 %v2614, %v2633
        %v2651 = vadd.f32 %v2615, %v2635
        %2652 = vst [vmem:[%s391] sm:$0xff] %v2644
        %2653 = vst [vmem:[%s391 + $0x8] sm:$0xff] %v2645
        %2654 = vst [vmem:[%s391 + $0x10] sm:$0xff] %v2646
        %2655 = vst [vmem:[%s391 + $0x18] sm:$0xff] %v2647
        %2656 = vst [vmem:[%s391 + $0x20] sm:$0xff] %v2648
        %2657 = vst [vmem:[%s391 + $0x28] sm:$0xff] %v2649
        %2658 = vst [vmem:[%s391 + $0x30] sm:$0xff] %v2650
        %2659 = vst [vmem:[%s391 + $0x38] sm:$0xff] %v2651
        %s2660 = sand.u32 %s201, 1
        %s2661 = scalar_lea.sflag [#allocation4], %s2660
        %s2662 = sand.u32 %s201, 1
        %s2663 = smul.addr %s2662, 64
        %s2664 = scalar_lea.vmem [#allocation14], %s2663
        // Predicated region
        $region77: #{tpu_custom_call.1} parent=47 // pred_check
          %p2665 = pneg %p211
        $region78: #{tpu_custom_call.1} parent=47 // pred_check_branch
          %2667 = sbr.rel (%p2665) target = $region80
        $region79: #{tpu_custom_call.1} parent=47 // pred_region
          %s2668 = smul.u32 4, %s32
          %s2670 = ssub.s32 1024, 1024
          %2671 = vsyncadd %s2661, %s2670
          %s2672 = smul.addr %s2668, 2
          %s2673 = smul.addr %s31, 32
          %s2674 = sadd.s32 %s2672, %s2673
          %s2675 = smul.addr %s2674, 128
          %s2676 = scalar_lea.hbm %s7, %s2675
          %s2677 = sshll.u32 %s2664, 4
          %s2678 = int_to_ptr.vmem [resolvable:$true] %s2677
          %2683 = dma.vmem_to_hbm [thread:$0]  %s2678, 1024, %s2676, %s2661, 128, 128, 8
        $region80: #{tpu_custom_call.1} parent=47 // pred_fallthru
          _
      $region48: #{tpu_custom_call.1} parent=5 // pred_fallthru
        _
      %p2684 = scmp.le.s32.totalorder 2, %s22
      // Predicated region
      $region81: #{tpu_custom_call.1} parent=5 // pred_check
        %p2685 = pneg %p2684
      $region82: #{tpu_custom_call.1} parent=5 // pred_check_branch
        %2687 = sbr.rel (%p2685) target = $region84
      $region83: #{tpu_custom_call.1} parent=5 // pred_region
        %s2688 = ssub.s32 %s22, 2
        // Predicated region
        $region85: #{tpu_custom_call.1} parent=83 // pred_check
          %p2689 = pneg %p217
        $region86: #{tpu_custom_call.1} parent=83 // pred_check_branch
          %2691 = sbr.rel (%p2689) target = $region88
        $region87: #{tpu_custom_call.1} parent=83 // pred_region
          %s2692 = sand.u32 %s202, 1
          %s2693 = scalar_lea.sflag [#allocation4], %s2692
          %s2694 = sand.u32 %s202, 1
          %s2695 = smul.addr %s2694, 64
          %s2696 = scalar_lea.vmem [#allocation14], %s2695
          %2697 = dma.done %s2693, 1024
        $region88: #{tpu_custom_call.1} parent=83 // pred_fallthru
          _
      $region84: #{tpu_custom_call.1} parent=5 // pred_fallthru
        _
    $region6: #{tpu_custom_call.1} parent=1 // loop_footer
      %s26 = sadd.s32 1, %s22
    $region7: #{tpu_custom_call.1} parent=1 // loop_footer_branch
      %21 = sbr.rel target = $region3
    $region8: #{tpu_custom_call.1} parent=1 // loop_exit
      _
    %2698 = vsyncpa [#allocation3], 1
    %s2699 = scalar_lea.sflag [#allocation3], 1
    %2700 = vsyncpa %s2699, 1
    %2701 = vsyncpa [#allocation6], 1
    %2702 = vsyncpa [#allocation9], 1
    %2703 = vsyncpa [#allocation12], 1
    %2704 = vsyncpa [#allocation4], 1
    %s2705 = scalar_lea.sflag [#allocation4], 1
    %2706 = vsyncpa %s2705, 1

</llo_original>
